<compile_context>
chip_gen: v7x
topology: tpu7x:2x2x1
jax: 0.10.0
libtpu: 0.0.40
codegen_flags: <defaults>
</compile_context>

<pallas_src>
import functools

import jax
import jax.numpy as jnp
from jax import lax
from jax.experimental import pallas as pl
from jax.experimental.pallas import tpu as pltpu


def c1_kernel(x_ref, top_ref, bot_ref, w1_ref, b1_ref, w2_ref, b2_ref, o_ref,
              xs_ref, *, W):
    """Fused C1 head for one (batch, row-tile) grid step, flat-pixel layout.

    x_ref:   (1, Cin, TP)       unpadded flat NCHW tile (TP = tile_rows * W)
    top_ref: (1, Cin, HL)       128-lane block just above the tile (row halo)
    bot_ref: (1, Cin, HL)       128-lane block just below the tile (row halo)
    w1_ref:  (9, Cmid, Cin)     3x3 conv weight, BN scale folded in, per tap
    b1_ref:  (Cmid, 1)          folded BN bias  = beta - mean * gamma/sqrt(var+eps)
    w2_ref:  (Cout, Cmid)       1x1 conv weight (transposed)
    b2_ref:  (Cout, 1)          1x1 conv bias
    o_ref:   (1, Cout, TP)      softmax probabilities (lane-dense pixels)
    xs_ref:  (Cin, TP + 2W + 2) VMEM scratch: haloed copy of the tile
    """
    t = pl.program_id(1)
    T = pl.num_programs(1)
    Cin, TP = x_ref.shape[1], x_ref.shape[2]
    HL = top_ref.shape[2]

    # ---- assemble the haloed tile in VMEM (one cheap in-VMEM copy) ----------
    # xs lane layout: [1 pad][W top-halo][TP main tile][W bottom-halo][1 pad]
    # The two single-lane pads are only ever read by column-masked taps.
    xs_ref[:, 0:1] = jnp.zeros((Cin, 1), xs_ref.dtype)
    xs_ref[:, TP + 2 * W + 1:TP + 2 * W + 2] = jnp.zeros((Cin, 1), xs_ref.dtype)
    xs_ref[:, W + 1:W + 1 + TP] = x_ref[0]

    @pl.when(t == 0)                                   # image top edge -> zeros
    def _():
        xs_ref[:, 1:W + 1] = jnp.zeros((Cin, W), xs_ref.dtype)

    @pl.when(t > 0)                                    # row above the tile
    def _():
        xs_ref[:, 1:W + 1] = top_ref[0, :, HL - W:]

    @pl.when(t == T - 1)                               # image bottom edge -> zeros
    def _():
        xs_ref[:, W + 1 + TP:2 * W + 1 + TP] = jnp.zeros((Cin, W), xs_ref.dtype)

    @pl.when(t < T - 1)                                # row below the tile
    def _():
        xs_ref[:, W + 1 + TP:2 * W + 1 + TP] = bot_ref[0, :, :W]

    # Column masks from a (1, TP) iota, broadcast inside the selects.
    col = lax.broadcasted_iota(jnp.int32, (1, TP), 1) % W
    not_first_col = col != 0                           # tap reads column j-1
    not_last_col = col != (W - 1)                      # tap reads column j+1

    # ---- 3x3 conv: nine accumulating K=Cin MXU matmuls ----------------------
    # Each tap operand is a static lane-offset slice of the haloed scratch.
    acc = None
    for a in range(3):            # reads input row  i + a - 1
        for b in range(3):        # reads input col  j + b - 1
            start = a * W + b     # == (W+1) + (a-1)*W + (b-1)
            tap = xs_ref[:, start:start + TP]          # (Cin, TP)
            if b == 0:
                tap = jnp.where(not_first_col, tap, 0)
            elif b == 2:
                tap = jnp.where(not_last_col, tap, 0)
            d = jnp.dot(w1_ref[3 * a + b], tap, preferred_element_type=jnp.float32)
            acc = d if acc is None else acc + d        # (Cmid, TP) f32

    # Folded BatchNorm bias (scale already in w1) + ReLU.
    y = jnp.maximum(acc + b1_ref[...], 0.0)

    # 1x1 convolution (channel matmul) + bias.
    z = jnp.dot(w2_ref[...], y, preferred_element_type=jnp.float32) + b2_ref[...]

    # Bilinear resize to (H, W) is the identity here (same spatial size).
    # Softmax over the class axis (sublane axis in this layout).
    z = z - jnp.max(z, axis=0, keepdims=True)
    e = jnp.exp(z)
    s = jnp.sum(e, axis=0, keepdims=True)
    r = pl.reciprocal(s, approx=True)
    r = r * (2.0 - s * r)                              # one Newton step -> ~f32 exact
    o_ref[0] = (e * r).astype(o_ref.dtype)


def _choose_tile_rows(H, W, Cin, itemsize, budget_bytes=4 << 20):
    """Largest row-tile whose input block stays under budget (halo-compatible)."""
    HW = H * W
    if Cin * HW * itemsize <= budget_bytes:
        return H                                        # whole image fits: T = 1
    HL = 128 * ((W + 127) // 128)
    valid = [th for th in range(1, H)
             if H % th == 0 and (th * W) % HL == 0
             and Cin * th * W * itemsize <= budget_bytes]
    return max(valid) if valid else H


def _vmem_limit_bytes(per_step_bytes):
    """Scoped-VMEM limit sized from the per-step footprint, with headroom."""
    cap = 64 << 20
    try:
        cap = int(pltpu.get_tpu_info().vmem_capacity_bytes)
    except Exception:
        pass
    want = int(1.5 * per_step_bytes) + (16 << 20)
    hi = max(cap - (16 << 20), 32 << 20)
    return int(min(max(want, 32 << 20), hi))


def c1_forward(x_nchw, w1_hwio, gamma, beta, mean, var, w2, b2, *, eps=1e-5,
               compute_dtype=jnp.float32, out_dtype=jnp.float32, tile_rows=None):
    """Full C1 forward. x_nchw: (N, Cin, H, W) like the PyTorch module."""
    N, Cin, H, W = x_nchw.shape
    Cmid = w1_hwio.shape[-1]
    Cout = w2.shape[-1]
    HW = H * W
    in_item = jnp.dtype(compute_dtype).itemsize
    out_item = jnp.dtype(out_dtype).itemsize

    # ---- pixel (row) tiling ---------------------------------------------------
    if tile_rows is None:
        tile_rows = _choose_tile_rows(H, W, Cin, in_item)
    TH = int(tile_rows)
    assert H % TH == 0, "tile_rows must divide H"
    T = H // TH
    TP = TH * W
    if T == 1:
        HL = HW                                         # halo block = whole (unused) image row set
    else:
        HL = 128 * ((W + 127) // 128)
        assert TP % HL == 0, "tile_rows*W must be a multiple of 128 when tiling"
    bpt = TP // HL                                      # halo blocks per tile
    nb = HW // HL                                       # halo blocks per image

    # ---- weight / BN prep (tiny, done once) -----------------------------------
    inv_std = 1.0 / jnp.sqrt(var.astype(jnp.float32) + eps)
    scale = gamma.astype(jnp.float32) * inv_std                      # (Cmid,)
    b1 = (beta.astype(jnp.float32) - mean.astype(jnp.float32) * scale
          ).reshape(Cmid, 1)
    # Fold BN scale into the conv weight; layout (tap, Cmid, Cin).
    w1f = (w1_hwio.astype(jnp.float32) * scale).reshape(9, Cin, Cmid)
    w1t = jnp.transpose(w1f, (0, 2, 1)).astype(compute_dtype)        # (9, Cmid, Cin)
    w2t = jnp.transpose(w2).astype(jnp.float32)                      # (Cout, Cmid)
    b2t = b2.reshape(Cout, 1).astype(jnp.float32)

    # Flat NCHW view (free reshape); no halo pad, no transpose.
    xf = x_nchw.reshape(N, Cin, HW).astype(compute_dtype)

    cost = pl.CostEstimate(
        flops=int(N * HW * (2 * 9 * Cin * Cmid + 2 * Cmid * Cout)),
        transcendentals=int(N * HW * Cout),
        bytes_accessed=int(N * Cin * HW * in_item
                           + N * Cout * HW * out_item
                           + w1t.size * in_item + w2t.size * 4
                           + b1.size * 4 + b2t.size * 4),
    )

    per_step = (2 * Cin * TP * in_item                  # main block, double-buffered
                + 2 * 2 * Cin * HL * in_item            # two halo blocks
                + 2 * Cout * TP * out_item              # output block
                + Cin * (TP + 2 * W + 2) * in_item      # halo scratch
                + (Cmid + 3 * Cout + 2 * Cin) * TP * 4  # f32 intermediates (rough)
                + 2 * (9 * Cmid * Cin * in_item + Cout * Cmid * 4))

    in_specs = [
        pl.BlockSpec((1, Cin, TP), lambda n, t: (n, 0, t)),
        pl.BlockSpec((1, Cin, HL),
                     lambda n, t: (n, 0, jnp.maximum(t * bpt - 1, 0))),
        pl.BlockSpec((1, Cin, HL),
                     lambda n, t: (n, 0, jnp.minimum((t + 1) * bpt, nb - 1))),
        pl.BlockSpec((9, Cmid, Cin), lambda n, t: (0, 0, 0)),
        pl.BlockSpec((Cmid, 1), lambda n, t: (0, 0)),
        pl.BlockSpec((Cout, Cmid), lambda n, t: (0, 0)),
        pl.BlockSpec((Cout, 1), lambda n, t: (0, 0)),
    ]

    out_flat = pl.pallas_call(
        functools.partial(c1_kernel, W=W),
        out_shape=jax.ShapeDtypeStruct((N, Cout, HW), out_dtype),
        grid_spec=pltpu.PrefetchScalarGridSpec(
            num_scalar_prefetch=0,
            grid=(N, T),
            in_specs=in_specs,
            out_specs=pl.BlockSpec((1, Cout, TP), lambda n, t: (n, 0, t)),
            scratch_shapes=[pltpu.VMEM((Cin, TP + 2 * W + 2), compute_dtype)],
        ),
        compiler_params=pltpu.CompilerParams(
            dimension_semantics=("parallel", "parallel"),   # batch x row-tiles
            vmem_limit_bytes=_vmem_limit_bytes(per_step),
        ),
        cost_estimate=cost,
    )(xf, xf, xf, w1t, b1, w2t, b2t)

    # Free metadata reshape back to NCHW (no transpose, no extra HBM pass).
    return out_flat.reshape(N, Cout, H, W)


def c1_reference(x_nchw, w1_hwio, gamma, beta, mean, var, w2, b2, eps=1e-5):
    """Pure-JAX reference (mirrors the PyTorch forward)."""
    x = jnp.transpose(x_nchw, (0, 2, 3, 1))
    y = lax.conv_general_dilated(
        x, w1_hwio, window_strides=(1, 1), padding="SAME",
        dimension_numbers=("NHWC", "HWIO", "NHWC"))
    y = (y - mean) / jnp.sqrt(var + eps) * gamma + beta
    y = jnp.maximum(y, 0.0)
    z = jnp.einsum("nhwc,cd->nhwd", y, w2) + b2
    z = jax.nn.softmax(z, axis=-1)
    return jnp.transpose(z, (0, 3, 1, 2))


if __name__ == "__main__":
    # Small, deterministic configuration consistent with the module:
    #   fc_dim = 32 -> cbr maps 32 -> 8 channels; num_class = 16; 16x16 image.
    N, H, W = 2, 16, 16
    fc_dim, num_class = 32, 16
    cmid = fc_dim // 4

    key = jax.random.PRNGKey(0)
    k_x, k_w1, k_w2, k_b2 = jax.random.split(key, 4)

    x = jax.random.normal(k_x, (N, fc_dim, H, W), dtype=jnp.float32)       # NCHW
    w1 = 0.1 * jax.random.normal(k_w1, (3, 3, fc_dim, cmid), jnp.float32)  # HWIO
    w2 = 0.1 * jax.random.normal(k_w2, (cmid, num_class), jnp.float32)
    b2 = 0.05 * jax.random.normal(k_b2, (num_class,), jnp.float32)

    # Deterministic BN parameters (inference-mode running stats).
    gamma = 1.0 + 0.1 * jnp.arange(cmid, dtype=jnp.float32) / cmid
    beta = 0.01 * jnp.arange(cmid, dtype=jnp.float32)
    mean = 0.02 * jnp.arange(cmid, dtype=jnp.float32)
    var = 1.0 + 0.05 * jnp.arange(cmid, dtype=jnp.float32)

    ref = c1_reference(x, w1, gamma, beta, mean, var, w2, b2)

    # Exact-semantics path (f32, f32 output), explicitly row-tiled (2 tiles per
    # image, TP = 128) so the cross-tile halo path is exercised.
    out_f32 = jax.block_until_ready(
        c1_forward(x, w1, gamma, beta, mean, var, w2, b2,
                   compute_dtype=jnp.float32, out_dtype=jnp.float32,
                   tile_rows=8))
    assert out_f32.shape == (N, num_class, H, W), out_f32.shape
    assert jnp.allclose(out_f32, ref, rtol=1e-3, atol=1e-4), (
        float(jnp.max(jnp.abs(out_f32 - ref))))

    # Bandwidth-optimized path: bf16 activations/conv weight + bf16 output
    # (f32 MXU accumulation), auto tile selection (single tile here).
    out_bf16 = jax.block_until_ready(
        c1_forward(x, w1, gamma, beta, mean, var, w2, b2,
                   compute_dtype=jnp.bfloat16, out_dtype=jnp.bfloat16))
    assert out_bf16.shape == (N, num_class, H, W), out_bf16.shape
    assert jnp.allclose(out_bf16.astype(jnp.float32), ref, rtol=5e-2, atol=1e-2), (
        float(jnp.max(jnp.abs(out_bf16.astype(jnp.float32) - ref))))

    print("KERNEL_OK")
</pallas_src>

<mosaic_0001>
module attributes {stable_mosaic.version = 11 : i64} {
  func.func @c1_kernel(%arg0: i32, %arg1: i32, %arg2: memref<1x32x128xf32, #tpu.memory_space<vmem>>, %arg3: memref<1x32x128xf32, #tpu.memory_space<vmem>>, %arg4: memref<1x32x128xf32, #tpu.memory_space<vmem>>, %arg5: memref<9x8x32xf32, #tpu.memory_space<vmem>>, %arg6: memref<8x1xf32, #tpu.memory_space<vmem>>, %arg7: memref<16x8xf32, #tpu.memory_space<vmem>>, %arg8: memref<16x1xf32, #tpu.memory_space<vmem>>, %arg9: memref<1x16x128xf32, #tpu.memory_space<vmem>>, %arg10: memref<32x162xf32, #tpu.memory_space<vmem>>) attributes {dimension_semantics = [#tpu.dimension_semantics<parallel>, #tpu.dimension_semantics<parallel>], iteration_bounds = array<i64: 2, 2>, scalar_prefetch = 0 : i64, scratch_operands = 1 : i64, tpu.core_type = #tpu.core_type<tc>, window_params = [{transform_indices = @transform_0, window_bounds = array<i64: 1, 32, 128>}, {transform_indices = @transform_1, window_bounds = array<i64: 1, 32, 128>}, {transform_indices = @transform_2, window_bounds = array<i64: 1, 32, 128>}, {pipeline_mode = #tpu.pipeline_mode<synchronous>, transform_indices = @transform_3, window_bounds = array<i64: 9, 8, 32>}, {pipeline_mode = #tpu.pipeline_mode<synchronous>, transform_indices = @transform_4, window_bounds = array<i64: 8, 1>}, {pipeline_mode = #tpu.pipeline_mode<synchronous>, transform_indices = @transform_5, window_bounds = array<i64: 16, 8>}, {pipeline_mode = #tpu.pipeline_mode<synchronous>, transform_indices = @transform_6, window_bounds = array<i64: 16, 1>}, {transform_indices = @transform_7, window_bounds = array<i64: 1, 16, 128>}]} {
    %cst = arith.constant 0.000000e+00 : f32
    %0 = vector.broadcast %cst : f32 to vector<32x1xf32>
    %c0 = arith.constant 0 : index
    %c0_0 = arith.constant 0 : index
    %1 = vector.load %arg10[%c0, %c0_0] : memref<32x162xf32, #tpu.memory_space<vmem>>, vector<32x1xf32>
    tpu.vector_store %arg10[%c0, %c0_0], %0 {strides = array<i32>} : memref<32x162xf32, #tpu.memory_space<vmem>>, vector<32x1xf32>,
    %cst_1 = arith.constant 0.000000e+00 : f32
    %2 = vector.broadcast %cst_1 : f32 to vector<32x1xf32>
    %c0_2 = arith.constant 0 : index
    %c161 = arith.constant 161 : index
    %3 = vector.load %arg10[%c0_2, %c161] : memref<32x162xf32, #tpu.memory_space<vmem>>, vector<32x1xf32>
    tpu.vector_store %arg10[%c0_2, %c161], %2 {strides = array<i32>} : memref<32x162xf32, #tpu.memory_space<vmem>>, vector<32x1xf32>,
    %c0_3 = arith.constant 0 : index
    %c0_4 = arith.constant 0 : index
    %c0_5 = arith.constant 0 : index
    %4 = vector.load %arg2[%c0_3, %c0_4, %c0_5] : memref<1x32x128xf32, #tpu.memory_space<vmem>>, vector<1x32x128xf32>
    %5 = vector.shape_cast %4 : vector<1x32x128xf32> to vector<32x128xf32>
    %c0_6 = arith.constant 0 : index
    %c17 = arith.constant 17 : index
    %6 = vector.load %arg10[%c0_6, %c17] : memref<32x162xf32, #tpu.memory_space<vmem>>, vector<32x128xf32>
    tpu.vector_store %arg10[%c0_6, %c17], %5 {strides = array<i32>} : memref<32x162xf32, #tpu.memory_space<vmem>>, vector<32x128xf32>,
    %c0_i32 = arith.constant 0 : i32
    %7 = arith.cmpi eq, %arg1, %c0_i32 : i32
    %8 = arith.extui %7 : i1 to i32
    %c0_i32_7 = arith.constant 0 : i32
    %9 = arith.cmpi ne, %8, %c0_i32_7 : i32
    scf.if %9 {
      %cst_80 = arith.constant 0.000000e+00 : f32
      %141 = vector.broadcast %cst_80 : f32 to vector<32x16xf32>
      %c0_81 = arith.constant 0 : index
      %c1_82 = arith.constant 1 : index
      %142 = vector.load %arg10[%c0_81, %c1_82] : memref<32x162xf32, #tpu.memory_space<vmem>>, vector<32x16xf32>
      tpu.vector_store %arg10[%c0_81, %c1_82], %141 {strides = array<i32>} : memref<32x162xf32, #tpu.memory_space<vmem>>, vector<32x16xf32>,
    } else {
    }
    %c0_i32_8 = arith.constant 0 : i32
    %10 = arith.cmpi sgt, %arg1, %c0_i32_8 : i32
    %11 = arith.extui %10 : i1 to i32
    %c0_i32_9 = arith.constant 0 : i32
    %12 = arith.cmpi ne, %11, %c0_i32_9 : i32
    scf.if %12 {
      %c0_80 = arith.constant 0 : index
      %c0_81 = arith.constant 0 : index
      %c112 = arith.constant 112 : index
      %141 = vector.load %arg3[%c0_80, %c0_81, %c112] : memref<1x32x128xf32, #tpu.memory_space<vmem>>, vector<1x32x16xf32>
      %142 = vector.shape_cast %141 : vector<1x32x16xf32> to vector<32x16xf32>
      %c0_82 = arith.constant 0 : index
      %c1_83 = arith.constant 1 : index
      %143 = vector.load %arg10[%c0_82, %c1_83] : memref<32x162xf32, #tpu.memory_space<vmem>>, vector<32x16xf32>
      tpu.vector_store %arg10[%c0_82, %c1_83], %142 {strides = array<i32>} : memref<32x162xf32, #tpu.memory_space<vmem>>, vector<32x16xf32>,
    } else {
    }
    %c1_i32 = arith.constant 1 : i32
    %13 = arith.cmpi eq, %arg1, %c1_i32 : i32
    %14 = arith.extui %13 : i1 to i32
    %c0_i32_10 = arith.constant 0 : i32
    %15 = arith.cmpi ne, %14, %c0_i32_10 : i32
    scf.if %15 {
      %cst_80 = arith.constant 0.000000e+00 : f32
      %141 = vector.broadcast %cst_80 : f32 to vector<32x16xf32>
      %c0_81 = arith.constant 0 : index
      %c145 = arith.constant 145 : index
      %142 = vector.load %arg10[%c0_81, %c145] : memref<32x162xf32, #tpu.memory_space<vmem>>, vector<32x16xf32>
      tpu.vector_store %arg10[%c0_81, %c145], %141 {strides = array<i32>} : memref<32x162xf32, #tpu.memory_space<vmem>>, vector<32x16xf32>,
    } else {
    }
    %c1_i32_11 = arith.constant 1 : i32
    %16 = arith.cmpi slt, %arg1, %c1_i32_11 : i32
    %17 = arith.extui %16 : i1 to i32
    %c0_i32_12 = arith.constant 0 : i32
    %18 = arith.cmpi ne, %17, %c0_i32_12 : i32
    scf.if %18 {
      %c0_80 = arith.constant 0 : index
      %c0_81 = arith.constant 0 : index
      %c0_82 = arith.constant 0 : index
      %141 = vector.load %arg4[%c0_80, %c0_81, %c0_82] : memref<1x32x128xf32, #tpu.memory_space<vmem>>, vector<1x32x16xf32>
      %142 = vector.shape_cast %141 : vector<1x32x16xf32> to vector<32x16xf32>
      %c0_83 = arith.constant 0 : index
      %c145 = arith.constant 145 : index
      %143 = vector.load %arg10[%c0_83, %c145] : memref<32x162xf32, #tpu.memory_space<vmem>>, vector<32x16xf32>
      tpu.vector_store %arg10[%c0_83, %c145], %142 {strides = array<i32>} : memref<32x162xf32, #tpu.memory_space<vmem>>, vector<32x16xf32>,
    } else {
    }
    %19 = tpu.iota {dimensions = array<i32: 1>} : vector<1x128xi32>
    %c16_i32 = arith.constant 16 : i32
    %c0_i32_13 = arith.constant 0 : i32
    %20 = arith.cmpi eq, %c16_i32, %c0_i32_13 : i32
    %c1_i32_14 = arith.constant 1 : i32
    %21 = arith.select %20, %c1_i32_14, %c16_i32 : i32
    %22 = vector.broadcast %21 : i32 to vector<1x128xi32>
    %23 = arith.remsi %19, %22 : vector<1x128xi32>
    %c0_i32_15 = arith.constant 0 : i32
    %24 = vector.broadcast %c0_i32_15 : i32 to vector<1x128xi32>
    %25 = arith.cmpi ne, %23, %24 : vector<1x128xi32>
    %c0_i32_16 = arith.constant 0 : i32
    %26 = vector.broadcast %c0_i32_16 : i32 to vector<1x128xi32>
    %27 = arith.cmpi slt, %23, %26 : vector<1x128xi32>
    %c0_i32_17 = arith.constant 0 : i32
    %28 = arith.cmpi slt, %21, %c0_i32_17 : i32
    %29 = vector.broadcast %28 : i1 to vector<1x128xi1>
    %30 = vector.broadcast %29 : vector<1x128xi1> to vector<1x128xi1>
    %31 = arith.xori %27, %30 : vector<1x128xi1>
    %32 = arith.andi %31, %25 : vector<1x128xi1>
    %33 = vector.broadcast %21 : i32 to vector<1x128xi32>
    %34 = arith.addi %23, %33 : vector<1x128xi32>
    %35 = arith.select %32, %34, %23 : vector<1x128xi1>, vector<1x128xi32>
    %c0_i32_18 = arith.constant 0 : i32
    %36 = vector.broadcast %c0_i32_18 : i32 to vector<1x128xi32>
    %37 = arith.cmpi ne, %35, %36 : vector<1x128xi32>
    %c15_i32 = arith.constant 15 : i32
    %38 = vector.broadcast %c15_i32 : i32 to vector<1x128xi32>
    %39 = arith.cmpi ne, %35, %38 : vector<1x128xi32>
    %c0_19 = arith.constant 0 : index
    %c0_20 = arith.constant 0 : index
    %40 = vector.load %arg10[%c0_19, %c0_20] : memref<32x162xf32, #tpu.memory_space<vmem>>, vector<32x128xf32>
    %c0_i32_21 = arith.constant 0 : i32
    %41 = arith.sitofp %c0_i32_21 : i32 to f32
    %42 = vector.shape_cast %37 : vector<1x128xi1> to vector<1x128xi1>
    %43 = vector.broadcast %42 : vector<1x128xi1> to vector<32x128xi1>
    %44 = vector.broadcast %41 : f32 to vector<32x128xf32>
    %45 = arith.select %43, %40, %44 : vector<32x128xi1>, vector<32x128xf32>
    %c0_22 = arith.constant 0 : index
    %c0_23 = arith.constant 0 : index
    %c0_24 = arith.constant 0 : index
    %46 = vector.load %arg5[%c0_22, %c0_23, %c0_24] : memref<9x8x32xf32, #tpu.memory_space<vmem>>, vector<1x8x32xf32>
    %47 = vector.shape_cast %46 : vector<1x8x32xf32> to vector<8x32xf32>
    %cst_25 = arith.constant dense<0.000000e+00> : vector<8x128xf32>
    %48 = tpu.matmul %47, %45, %cst_25 {dimension_numbers = #tpu.dot_dimension_numbers<[1], [0], [0], [1], [0, 0, 1, 1], [], []>} : vector<8x32xf32>, vector<32x128xf32>, vector<8x128xf32> -> vector<8x128xf32>
    %c0_26 = arith.constant 0 : index
    %c1 = arith.constant 1 : index
    %49 = vector.load %arg10[%c0_26, %c1] : memref<32x162xf32, #tpu.memory_space<vmem>>, vector<32x128xf32>
    %c1_27 = arith.constant 1 : index
    %c0_28 = arith.constant 0 : index
    %c0_29 = arith.constant 0 : index
    %50 = vector.load %arg5[%c1_27, %c0_28, %c0_29] : memref<9x8x32xf32, #tpu.memory_space<vmem>>, vector<1x8x32xf32>
    %51 = vector.shape_cast %50 : vector<1x8x32xf32> to vector<8x32xf32>
    %cst_30 = arith.constant dense<0.000000e+00> : vector<8x128xf32>
    %52 = tpu.matmul %51, %49, %cst_30 {dimension_numbers = #tpu.dot_dimension_numbers<[1], [0], [0], [1], [0, 0, 1, 1], [], []>} : vector<8x32xf32>, vector<32x128xf32>, vector<8x128xf32> -> vector<8x128xf32>
    %53 = arith.addf %48, %52 : vector<8x128xf32>
    %c0_31 = arith.constant 0 : index
    %c2 = arith.constant 2 : index
    %54 = vector.load %arg10[%c0_31, %c2] : memref<32x162xf32, #tpu.memory_space<vmem>>, vector<32x128xf32>
    %c0_i32_32 = arith.constant 0 : i32
    %55 = arith.sitofp %c0_i32_32 : i32 to f32
    %56 = vector.shape_cast %39 : vector<1x128xi1> to vector<1x128xi1>
    %57 = vector.broadcast %56 : vector<1x128xi1> to vector<32x128xi1>
    %58 = vector.broadcast %55 : f32 to vector<32x128xf32>
    %59 = arith.select %57, %54, %58 : vector<32x128xi1>, vector<32x128xf32>
    %c2_33 = arith.constant 2 : index
    %c0_34 = arith.constant 0 : index
    %c0_35 = arith.constant 0 : index
    %60 = vector.load %arg5[%c2_33, %c0_34, %c0_35] : memref<9x8x32xf32, #tpu.memory_space<vmem>>, vector<1x8x32xf32>
    %61 = vector.shape_cast %60 : vector<1x8x32xf32> to vector<8x32xf32>
    %cst_36 = arith.constant dense<0.000000e+00> : vector<8x128xf32>
    %62 = tpu.matmul %61, %59, %cst_36 {dimension_numbers = #tpu.dot_dimension_numbers<[1], [0], [0], [1], [0, 0, 1, 1], [], []>} : vector<8x32xf32>, vector<32x128xf32>, vector<8x128xf32> -> vector<8x128xf32>
    %63 = arith.addf %53, %62 : vector<8x128xf32>
    %c0_37 = arith.constant 0 : index
    %c16 = arith.constant 16 : index
    %64 = vector.load %arg10[%c0_37, %c16] : memref<32x162xf32, #tpu.memory_space<vmem>>, vector<32x128xf32>
    %c0_i32_38 = arith.constant 0 : i32
    %65 = arith.sitofp %c0_i32_38 : i32 to f32
    %66 = vector.shape_cast %37 : vector<1x128xi1> to vector<1x128xi1>
    %67 = vector.broadcast %66 : vector<1x128xi1> to vector<32x128xi1>
    %68 = vector.broadcast %65 : f32 to vector<32x128xf32>
    %69 = arith.select %67, %64, %68 : vector<32x128xi1>, vector<32x128xf32>
    %c3 = arith.constant 3 : index
    %c0_39 = arith.constant 0 : index
    %c0_40 = arith.constant 0 : index
    %70 = vector.load %arg5[%c3, %c0_39, %c0_40] : memref<9x8x32xf32, #tpu.memory_space<vmem>>, vector<1x8x32xf32>
    %71 = vector.shape_cast %70 : vector<1x8x32xf32> to vector<8x32xf32>
    %cst_41 = arith.constant dense<0.000000e+00> : vector<8x128xf32>
    %72 = tpu.matmul %71, %69, %cst_41 {dimension_numbers = #tpu.dot_dimension_numbers<[1], [0], [0], [1], [0, 0, 1, 1], [], []>} : vector<8x32xf32>, vector<32x128xf32>, vector<8x128xf32> -> vector<8x128xf32>
    %73 = arith.addf %63, %72 : vector<8x128xf32>
    %c0_42 = arith.constant 0 : index
    %c17_43 = arith.constant 17 : index
    %74 = vector.load %arg10[%c0_42, %c17_43] : memref<32x162xf32, #tpu.memory_space<vmem>>, vector<32x128xf32>
    %c4 = arith.constant 4 : index
    %c0_44 = arith.constant 0 : index
    %c0_45 = arith.constant 0 : index
    %75 = vector.load %arg5[%c4, %c0_44, %c0_45] : memref<9x8x32xf32, #tpu.memory_space<vmem>>, vector<1x8x32xf32>
    %76 = vector.shape_cast %75 : vector<1x8x32xf32> to vector<8x32xf32>
    %cst_46 = arith.constant dense<0.000000e+00> : vector<8x128xf32>
    %77 = tpu.matmul %76, %74, %cst_46 {dimension_numbers = #tpu.dot_dimension_numbers<[1], [0], [0], [1], [0, 0, 1, 1], [], []>} : vector<8x32xf32>, vector<32x128xf32>, vector<8x128xf32> -> vector<8x128xf32>
    %78 = arith.addf %73, %77 : vector<8x128xf32>
    %c0_47 = arith.constant 0 : index
    %c18 = arith.constant 18 : index
    %79 = vector.load %arg10[%c0_47, %c18] : memref<32x162xf32, #tpu.memory_space<vmem>>, vector<32x128xf32>
    %c0_i32_48 = arith.constant 0 : i32
    %80 = arith.sitofp %c0_i32_48 : i32 to f32
    %81 = vector.shape_cast %39 : vector<1x128xi1> to vector<1x128xi1>
    %82 = vector.broadcast %81 : vector<1x128xi1> to vector<32x128xi1>
    %83 = vector.broadcast %80 : f32 to vector<32x128xf32>
    %84 = arith.select %82, %79, %83 : vector<32x128xi1>, vector<32x128xf32>
    %c5 = arith.constant 5 : index
    %c0_49 = arith.constant 0 : index
    %c0_50 = arith.constant 0 : index
    %85 = vector.load %arg5[%c5, %c0_49, %c0_50] : memref<9x8x32xf32, #tpu.memory_space<vmem>>, vector<1x8x32xf32>
    %86 = vector.shape_cast %85 : vector<1x8x32xf32> to vector<8x32xf32>
    %cst_51 = arith.constant dense<0.000000e+00> : vector<8x128xf32>
    %87 = tpu.matmul %86, %84, %cst_51 {dimension_numbers = #tpu.dot_dimension_numbers<[1], [0], [0], [1], [0, 0, 1, 1], [], []>} : vector<8x32xf32>, vector<32x128xf32>, vector<8x128xf32> -> vector<8x128xf32>
    %88 = arith.addf %78, %87 : vector<8x128xf32>
    %c0_52 = arith.constant 0 : index
    %c32 = arith.constant 32 : index
    %89 = vector.load %arg10[%c0_52, %c32] : memref<32x162xf32, #tpu.memory_space<vmem>>, vector<32x128xf32>
    %c0_i32_53 = arith.constant 0 : i32
    %90 = arith.sitofp %c0_i32_53 : i32 to f32
    %91 = vector.shape_cast %37 : vector<1x128xi1> to vector<1x128xi1>
    %92 = vector.broadcast %91 : vector<1x128xi1> to vector<32x128xi1>
    %93 = vector.broadcast %90 : f32 to vector<32x128xf32>
    %94 = arith.select %92, %89, %93 : vector<32x128xi1>, vector<32x128xf32>
    %c6 = arith.constant 6 : index
    %c0_54 = arith.constant 0 : index
    %c0_55 = arith.constant 0 : index
    %95 = vector.load %arg5[%c6, %c0_54, %c0_55] : memref<9x8x32xf32, #tpu.memory_space<vmem>>, vector<1x8x32xf32>
    %96 = vector.shape_cast %95 : vector<1x8x32xf32> to vector<8x32xf32>
    %cst_56 = arith.constant dense<0.000000e+00> : vector<8x128xf32>
    %97 = tpu.matmul %96, %94, %cst_56 {dimension_numbers = #tpu.dot_dimension_numbers<[1], [0], [0], [1], [0, 0, 1, 1], [], []>} : vector<8x32xf32>, vector<32x128xf32>, vector<8x128xf32> -> vector<8x128xf32>
    %98 = arith.addf %88, %97 : vector<8x128xf32>
    %c0_57 = arith.constant 0 : index
    %c33 = arith.constant 33 : index
    %99 = vector.load %arg10[%c0_57, %c33] : memref<32x162xf32, #tpu.memory_space<vmem>>, vector<32x128xf32>
    %c7 = arith.constant 7 : index
    %c0_58 = arith.constant 0 : index
    %c0_59 = arith.constant 0 : index
    %100 = vector.load %arg5[%c7, %c0_58, %c0_59] : memref<9x8x32xf32, #tpu.memory_space<vmem>>, vector<1x8x32xf32>
    %101 = vector.shape_cast %100 : vector<1x8x32xf32> to vector<8x32xf32>
    %cst_60 = arith.constant dense<0.000000e+00> : vector<8x128xf32>
    %102 = tpu.matmul %101, %99, %cst_60 {dimension_numbers = #tpu.dot_dimension_numbers<[1], [0], [0], [1], [0, 0, 1, 1], [], []>} : vector<8x32xf32>, vector<32x128xf32>, vector<8x128xf32> -> vector<8x128xf32>
    %103 = arith.addf %98, %102 : vector<8x128xf32>
    %c0_61 = arith.constant 0 : index
    %c34 = arith.constant 34 : index
    %104 = vector.load %arg10[%c0_61, %c34] : memref<32x162xf32, #tpu.memory_space<vmem>>, vector<32x128xf32>
    %c0_i32_62 = arith.constant 0 : i32
    %105 = arith.sitofp %c0_i32_62 : i32 to f32
    %106 = vector.shape_cast %39 : vector<1x128xi1> to vector<1x128xi1>
    %107 = vector.broadcast %106 : vector<1x128xi1> to vector<32x128xi1>
    %108 = vector.broadcast %105 : f32 to vector<32x128xf32>
    %109 = arith.select %107, %104, %108 : vector<32x128xi1>, vector<32x128xf32>
    %c8 = arith.constant 8 : index
    %c0_63 = arith.constant 0 : index
    %c0_64 = arith.constant 0 : index
    %110 = vector.load %arg5[%c8, %c0_63, %c0_64] : memref<9x8x32xf32, #tpu.memory_space<vmem>>, vector<1x8x32xf32>
    %111 = vector.shape_cast %110 : vector<1x8x32xf32> to vector<8x32xf32>
    %cst_65 = arith.constant dense<0.000000e+00> : vector<8x128xf32>
    %112 = tpu.matmul %111, %109, %cst_65 {dimension_numbers = #tpu.dot_dimension_numbers<[1], [0], [0], [1], [0, 0, 1, 1], [], []>} : vector<8x32xf32>, vector<32x128xf32>, vector<8x128xf32> -> vector<8x128xf32>
    %113 = arith.addf %103, %112 : vector<8x128xf32>
    %c0_66 = arith.constant 0 : index
    %c0_67 = arith.constant 0 : index
    %114 = vector.load %arg6[%c0_66, %c0_67] : memref<8x1xf32, #tpu.memory_space<vmem>>, vector<8x1xf32>
    %115 = vector.broadcast %114 : vector<8x1xf32> to vector<8x128xf32>
    %116 = arith.addf %113, %115 : vector<8x128xf32>
    %cst_68 = arith.constant 0.000000e+00 : f32
    %117 = vector.broadcast %cst_68 : f32 to vector<8x128xf32>
    %118 = arith.maximumf %116, %117 : vector<8x128xf32>
    %c0_69 = arith.constant 0 : index
    %c0_70 = arith.constant 0 : index
    %119 = vector.load %arg7[%c0_69, %c0_70] : memref<16x8xf32, #tpu.memory_space<vmem>>, vector<16x8xf32>
    %cst_71 = arith.constant dense<0.000000e+00> : vector<16x128xf32>
    %120 = tpu.matmul %119, %118, %cst_71 {dimension_numbers = #tpu.dot_dimension_numbers<[1], [0], [0], [1], [0, 0, 1, 1], [], []>} : vector<16x8xf32>, vector<8x128xf32>, vector<16x128xf32> -> vector<16x128xf32>
    %c0_72 = arith.constant 0 : index
    %c0_73 = arith.constant 0 : index
    %121 = vector.load %arg8[%c0_72, %c0_73] : memref<16x1xf32, #tpu.memory_space<vmem>>, vector<16x1xf32>
    %122 = vector.broadcast %121 : vector<16x1xf32> to vector<16x128xf32>
    %123 = arith.addf %120, %122 : vector<16x128xf32>
    %cst_74 = arith.constant dense<0xFF800000> : vector<128xf32>
    %124 = vector.multi_reduction <maximumf>, %123, %cst_74 [0] : vector<16x128xf32> to vector<128xf32>
    %125 = vector.shape_cast %124 : vector<128xf32> to vector<1x128xf32>
    %126 = vector.broadcast %125 : vector<1x128xf32> to vector<16x128xf32>
    %127 = arith.subf %123, %126 : vector<16x128xf32>
    %128 = math.exp %127 : vector<16x128xf32>
    %cst_75 = arith.constant dense<0.000000e+00> : vector<128xf32>
    %129 = vector.multi_reduction <add>, %128, %cst_75 [0] : vector<16x128xf32> to vector<128xf32>
    %130 = vector.shape_cast %129 : vector<128xf32> to vector<1x128xf32>
    %131 = tpu.reciprocal %130 {approx = true} : vector<1x128xf32> -> vector<1x128xf32>
    %132 = arith.mulf %130, %131 : vector<1x128xf32>
    %cst_76 = arith.constant 2.000000e+00 : f32
    %133 = vector.broadcast %cst_76 : f32 to vector<1x128xf32>
    %134 = arith.subf %133, %132 : vector<1x128xf32>
    %135 = arith.mulf %131, %134 : vector<1x128xf32>
    %136 = vector.broadcast %135 : vector<1x128xf32> to vector<16x128xf32>
    %137 = arith.mulf %128, %136 : vector<16x128xf32>
    %c0_77 = arith.constant 0 : index
    %c0_78 = arith.constant 0 : index
    %c0_79 = arith.constant 0 : index
    %138 = vector.load %arg9[%c0_77, %c0_78, %c0_79] : memref<1x16x128xf32, #tpu.memory_space<vmem>>, vector<1x16x128xf32>
    %139 = vector.shape_cast %138 : vector<1x16x128xf32> to vector<16x128xf32>
    %140 = vector.shape_cast %137 : vector<16x128xf32> to vector<1x16x128xf32>
    tpu.vector_store %arg9[%c0_77, %c0_78, %c0_79], %140 {strides = array<i32>} : memref<1x16x128xf32, #tpu.memory_space<vmem>>, vector<1x16x128xf32>,
    return
  }
  func.func @transform_0(%arg0: i32, %arg1: i32) -> (i32, i32, i32) {
    %c0_i32 = arith.constant 0 : i32
    %c0_i32_0 = arith.constant 0 : i32
    return %arg0, %c0_i32, %arg1 : i32, i32, i32
  }
  func.func @transform_1(%arg0: i32, %arg1: i32) -> (i32, i32, i32) {
    %c1_i32 = arith.constant 1 : i32
    %0 = arith.muli %arg1, %c1_i32 : i32
    %c1_i32_0 = arith.constant 1 : i32
    %1 = arith.subi %0, %c1_i32_0 : i32
    %c0_i32 = arith.constant 0 : i32
    %2 = arith.maxsi %1, %c0_i32 : i32
    %c0_i32_1 = arith.constant 0 : i32
    %c0_i32_2 = arith.constant 0 : i32
    return %arg0, %c0_i32_1, %2 : i32, i32, i32
  }
  func.func @transform_2(%arg0: i32, %arg1: i32) -> (i32, i32, i32) {
    %c1_i32 = arith.constant 1 : i32
    %0 = arith.addi %arg1, %c1_i32 : i32
    %c1_i32_0 = arith.constant 1 : i32
    %1 = arith.muli %0, %c1_i32_0 : i32
    %c1_i32_1 = arith.constant 1 : i32
    %2 = arith.minsi %1, %c1_i32_1 : i32
    %c0_i32 = arith.constant 0 : i32
    %c0_i32_2 = arith.constant 0 : i32
    return %arg0, %c0_i32, %2 : i32, i32, i32
  }
  func.func @transform_3(%arg0: i32, %arg1: i32) -> (i32, i32, i32) {
    %c0_i32 = arith.constant 0 : i32
    %c0_i32_0 = arith.constant 0 : i32
    %c0_i32_1 = arith.constant 0 : i32
    %c0_i32_2 = arith.constant 0 : i32
    return %c0_i32, %c0_i32_0, %c0_i32_1 : i32, i32, i32
  }
  func.func @transform_4(%arg0: i32, %arg1: i32) -> (i32, i32) {
    %c0_i32 = arith.constant 0 : i32
    %c0_i32_0 = arith.constant 0 : i32
    %c0_i32_1 = arith.constant 0 : i32
    return %c0_i32, %c0_i32_0 : i32, i32
  }
  func.func @transform_5(%arg0: i32, %arg1: i32) -> (i32, i32) {
    %c0_i32 = arith.constant 0 : i32
    %c0_i32_0 = arith.constant 0 : i32
    %c0_i32_1 = arith.constant 0 : i32
    return %c0_i32, %c0_i32_0 : i32, i32
  }
  func.func @transform_6(%arg0: i32, %arg1: i32) -> (i32, i32) {
    %c0_i32 = arith.constant 0 : i32
    %c0_i32_0 = arith.constant 0 : i32
    %c0_i32_1 = arith.constant 0 : i32
    return %c0_i32, %c0_i32_0 : i32, i32
  }
  func.func @transform_7(%arg0: i32, %arg1: i32) -> (i32, i32, i32) {
    %c0_i32 = arith.constant 0 : i32
    %c0_i32_0 = arith.constant 0 : i32
    return %arg0, %c0_i32, %arg1 : i32, i32, i32
  }
}

</mosaic_0001>

<llo_original>
// kernel: tpu_custom_call.1
$region0: #{tpu_custom_call.1}
  #allocation0 [shape = 'u32[]', space=smem, size = 0x4, offset = 0x4, fixed_abs, tag = 'smem constant byte address 0x4 - core index']
  #allocation1 [shape = 'u32[144,128]{1,0:T(1,128)}', space=vmem, size = 0x12000, scoped, tag = 'internal scratch']
  #allocation2 [shape = 'f32[32,162]{1,0:T(8,128)}', space=vmem, size = 0x8000, scoped, tag = 'scratch operand']
  %s0 = inlined_call_operand.hbm [shape: f32[2,32,256], index: 0, kind: input, shape index: {}]
  %s1 = inlined_call_operand.hbm [shape: f32[2,32,256], index: 1, kind: input, shape index: {}]
  %s2 = inlined_call_operand.hbm [shape: f32[2,32,256], index: 2, kind: input, shape index: {}]
  %s3 = inlined_call_operand.hbm [shape: f32[9,8,32], index: 3, kind: input, shape index: {}]
  %s4 = inlined_call_operand.vmem [shape: f32[8,1], index: 4, kind: input, shape index: {}]
  %s5 = inlined_call_operand.vmem [shape: f32[16,8], index: 5, kind: input, shape index: {}]
  %s6 = inlined_call_operand.vmem [shape: f32[16,1], index: 6, kind: input, shape index: {}]
  %s7 = inlined_call_operand.hbm [shape: f32[2,16,256], index: 7, kind: output, shape index: {}]
  %s8 = sld [smem:[#allocation0]]
  $region93: #{tpu_custom_call.1} parent=0
    _
  %s10 = ssub.s32 1, %s8
  %s11 = scalar_select 0, %s10, %s8
  $region1: #{tpu_custom_call.1} parent=0
    #allocation3 [shape = 'u8[32768]{0}', space=vmem, size = 0x8000, scoped, tag = 'input window, operand 0']
    #allocation4 [shape = 's32[2]{0}', space=sflag, size = 0x8, scoped, tag = 'scoped memory for tpu_custom_call.1']
    #allocation5 [shape = 's32[2]{0}', space=sflag, size = 0x8, scoped, tag = 'scoped memory for tpu_custom_call.1']
    #allocation6 [shape = 'u8[32768]{0}', space=vmem, size = 0x8000, scoped, tag = 'input window, operand 1']
    #allocation7 [shape = 's32[2]{0}', space=sflag, size = 0x8, scoped, tag = 'scoped memory for tpu_custom_call.1']
    #allocation8 [shape = 'u8[32768]{0}', space=vmem, size = 0x8000, scoped, tag = 'input window, operand 2']
    #allocation9 [shape = 'u8[36864]{0}', space=vmem, size = 0x9000, scoped, tag = 'input window, operand 3, single buffered']
    #allocation10 [shape = 's32[1]{0}', space=sflag, size = 0x4, scoped, tag = 'scoped memory for tpu_custom_call.1']
    #allocation11 [shape = 'u8[16384]{0}', space=vmem, size = 0x4000, scoped, tag = 'output window, operand 0']
    %12 = vsyncpa [#allocation4], 0
    %s13 = scalar_lea.sflag [#allocation4], 1
    %14 = vsyncpa %s13, 0
    %15 = vsyncpa [#allocation7], 0
    %s16 = scalar_lea.sflag [#allocation7], 1
    %17 = vsyncpa %s16, 0
    %18 = vsyncpa [#allocation10], 0
    %19 = vsyncpa [#allocation5], 0
    %s20 = scalar_lea.sflag [#allocation5], 1
    %21 = vsyncpa %s20, 0
    loop: start=0, step=1, limit=6
    $region2: #{tpu_custom_call.1} parent=1 // loop_pre_header
      _
    $region3: #{tpu_custom_call.1} parent=1 // loop_header
      %s23 = sphi 0, %s27
      %p24 = scmp.ge.s32.totalorder %s23, 6
      %s30 = sphi 0, %s42
      %s31 = sphi 0, %s38
      %s32 = sphi 0, %s30
      %s33 = sphi 0, %s31
      %s34 = sphi 0, %s32
      %s35 = sphi 0, %s33
      %s47 = sphi 0, %s49
      %s50 = sphi 0, %s47
      %s51 = sphi 0, %s50
      %s67 = sphi 0, %s51
      %s81 = sphi 0, %s83
      %s84 = sphi 0, %s81
      %s85 = sphi 0, %s84
      %s101 = sphi 0, %s85
      %s115 = sphi 0, %s117
      %s118 = sphi 0, %s115
      %s119 = sphi 0, %s118
      %s135 = sphi 0, %s119
      %s139 = sphi 0, %s139
      %s141 = sphi 0, %s139
      %s142 = sphi 0, %s141
      %s156 = sphi 0, %s142
      %s160 = sphi 0, %s160
      %s162 = sphi 0, %s160
      %s163 = sphi 0, %s162
      %s177 = sphi 0, %s163
      %s181 = sphi 0, %s181
      %s183 = sphi 0, %s181
      %s184 = sphi 0, %s183
      %s198 = sphi 0, %s184
      %s202 = sphi 0, %s202
      %s204 = sphi 0, %s202
      %s205 = sphi 0, %s204
      %s219 = sphi 0, %s205
      %s227 = sphi 0, %s229
      %s230 = sphi 0, %s227
      %s231 = sphi 0, %s230
      %s247 = sphi 0, %s231
    $region4: #{tpu_custom_call.1} parent=1 // loop_header_branch
      %26 = sbr.rel (%p24) target = $region8
    $region5: #{tpu_custom_call.1} parent=1 // loop_body
      %s28 = ssub.s32 %s23, 1
      %s29 = ssub.s32 %s23, 2
      %s36 = sadd.s32 1, %s31
      %p37 = scmp.ge.s32.totalorder %s36, 2
      %s38 = scalar_select %p37, 0, %s36
      %s39 = sadd.s32 1, %s30
      %s40 = scalar_select %p37, %s39, %s30
      %p41 = scmp.ge.s32.totalorder %s40, 2
      %s42 = scalar_select %p41, 0, %s40
      %s43 = ssub.s32 %s30, %s42
      %s44 = ssub.s32 %s31, %s38
      %s45 = sor.u32 %s43, %s44
      %p46 = scmp.eq.s32.totalorder %s45, 0
      %s48 = sadd.s32 %s47, 1
      %s49 = scalar_select %p46, %s47, %s48
      %p52 = pneg %p46
      %p53 = scmp.eq.s32.totalorder %s23, 3
      %p54 = por %p52, %p53
      %p55 = scmp.ne.s32.totalorder %s47, %s50
      %p56 = scmp.eq.s32.totalorder %s23, 0
      %p57 = por %p55, %p56
      %p58 = scmp.ne.s32.totalorder %s47, %s50
      %p59 = scmp.eq.s32.totalorder %s28, 3
      %p60 = por %p58, %p59
      %p61 = scmp.ne.s32.totalorder %s50, %s51
      %p62 = scmp.eq.s32.totalorder %s28, 0
      %p63 = por %p61, %p62
      %p64 = scmp.ne.s32.totalorder %s50, %s51
      %p65 = scmp.eq.s32.totalorder %s29, 3
      %p66 = por %p64, %p65
      %p68 = scmp.ne.s32.totalorder %s51, %s67
      %p69 = scmp.eq.s32.totalorder %s29, 0
      %p70 = por %p68, %p69
      %s71 = ssub.s32 %s31, 1
      %p72 = scmp.gt.s32.totalorder %s71, 0
      %s73 = scalar_select %p72, %s71, 0
      %s74 = ssub.s32 %s38, 1
      %p75 = scmp.gt.s32.totalorder %s74, 0
      %s76 = scalar_select %p75, %s74, 0
      %s77 = ssub.s32 %s30, %s42
      %s78 = ssub.s32 %s73, %s76
      %s79 = sor.u32 %s77, %s78
      %p80 = scmp.eq.s32.totalorder %s79, 0
      %s82 = sadd.s32 %s81, 1
      %s83 = scalar_select %p80, %s81, %s82
      %p86 = pneg %p80
      %p87 = scmp.eq.s32.totalorder %s23, 3
      %p88 = por %p86, %p87
      %p89 = scmp.ne.s32.totalorder %s81, %s84
      %p90 = scmp.eq.s32.totalorder %s23, 0
      %p91 = por %p89, %p90
      %p92 = scmp.ne.s32.totalorder %s81, %s84
      %p93 = scmp.eq.s32.totalorder %s28, 3
      %p94 = por %p92, %p93
      %p95 = scmp.ne.s32.totalorder %s84, %s85
      %p96 = scmp.eq.s32.totalorder %s28, 0
      %p97 = por %p95, %p96
      %p98 = scmp.ne.s32.totalorder %s84, %s85
      %p99 = scmp.eq.s32.totalorder %s29, 3
      %p100 = por %p98, %p99
      %p102 = scmp.ne.s32.totalorder %s85, %s101
      %p103 = scmp.eq.s32.totalorder %s29, 0
      %p104 = por %p102, %p103
      %s105 = sadd.s32 %s31, 1
      %p106 = scmp.lt.s32.totalorder %s105, 1
      %s107 = scalar_select %p106, %s105, 1
      %s108 = sadd.s32 %s38, 1
      %p109 = scmp.lt.s32.totalorder %s108, 1
      %s110 = scalar_select %p109, %s108, 1
      %s111 = ssub.s32 %s30, %s42
      %s112 = ssub.s32 %s107, %s110
      %s113 = sor.u32 %s111, %s112
      %p114 = scmp.eq.s32.totalorder %s113, 0
      %s116 = sadd.s32 %s115, 1
      %s117 = scalar_select %p114, %s115, %s116
      %p120 = pneg %p114
      %p121 = scmp.eq.s32.totalorder %s23, 3
      %p122 = por %p120, %p121
      %p123 = scmp.ne.s32.totalorder %s115, %s118
      %p124 = scmp.eq.s32.totalorder %s23, 0
      %p125 = por %p123, %p124
      %p126 = scmp.ne.s32.totalorder %s115, %s118
      %p127 = scmp.eq.s32.totalorder %s28, 3
      %p128 = por %p126, %p127
      %p129 = scmp.ne.s32.totalorder %s118, %s119
      %p130 = scmp.eq.s32.totalorder %s28, 0
      %p131 = por %p129, %p130
      %p132 = scmp.ne.s32.totalorder %s118, %s119
      %p133 = scmp.eq.s32.totalorder %s29, 3
      %p134 = por %p132, %p133
      %p136 = scmp.ne.s32.totalorder %s119, %s135
      %p137 = scmp.eq.s32.totalorder %s29, 0
      %p138 = por %p136, %p137
      %s140 = sadd.s32 %s139, 1
      %p143 = scmp.eq.s32.totalorder %s23, 3
      %p144 = scmp.ne.s32.totalorder %s139, %s141
      %p145 = scmp.eq.s32.totalorder %s23, 0
      %p146 = por %p144, %p145
      %p147 = scmp.ne.s32.totalorder %s139, %s141
      %p148 = scmp.eq.s32.totalorder %s28, 3
      %p149 = por %p147, %p148
      %p150 = scmp.ne.s32.totalorder %s141, %s142
      %p151 = scmp.eq.s32.totalorder %s28, 0
      %p152 = por %p150, %p151
      %p153 = scmp.ne.s32.totalorder %s141, %s142
      %p154 = scmp.eq.s32.totalorder %s29, 3
      %p155 = por %p153, %p154
      %p157 = scmp.ne.s32.totalorder %s142, %s156
      %p158 = scmp.eq.s32.totalorder %s29, 0
      %p159 = por %p157, %p158
      %s161 = sadd.s32 %s160, 1
      %p164 = scmp.eq.s32.totalorder %s23, 3
      %p165 = scmp.ne.s32.totalorder %s160, %s162
      %p166 = scmp.eq.s32.totalorder %s23, 0
      %p167 = por %p165, %p166
      %p168 = scmp.ne.s32.totalorder %s160, %s162
      %p169 = scmp.eq.s32.totalorder %s28, 3
      %p170 = por %p168, %p169
      %p171 = scmp.ne.s32.totalorder %s162, %s163
      %p172 = scmp.eq.s32.totalorder %s28, 0
      %p173 = por %p171, %p172
      %p174 = scmp.ne.s32.totalorder %s162, %s163
      %p175 = scmp.eq.s32.totalorder %s29, 3
      %p176 = por %p174, %p175
      %p178 = scmp.ne.s32.totalorder %s163, %s177
      %p179 = scmp.eq.s32.totalorder %s29, 0
      %p180 = por %p178, %p179
      %s182 = sadd.s32 %s181, 1
      %p185 = scmp.eq.s32.totalorder %s23, 3
      %p186 = scmp.ne.s32.totalorder %s181, %s183
      %p187 = scmp.eq.s32.totalorder %s23, 0
      %p188 = por %p186, %p187
      %p189 = scmp.ne.s32.totalorder %s181, %s183
      %p190 = scmp.eq.s32.totalorder %s28, 3
      %p191 = por %p189, %p190
      %p192 = scmp.ne.s32.totalorder %s183, %s184
      %p193 = scmp.eq.s32.totalorder %s28, 0
      %p194 = por %p192, %p193
      %p195 = scmp.ne.s32.totalorder %s183, %s184
      %p196 = scmp.eq.s32.totalorder %s29, 3
      %p197 = por %p195, %p196
      %p199 = scmp.ne.s32.totalorder %s184, %s198
      %p200 = scmp.eq.s32.totalorder %s29, 0
      %p201 = por %p199, %p200
      %s203 = sadd.s32 %s202, 1
      %p206 = scmp.eq.s32.totalorder %s23, 3
      %p207 = scmp.ne.s32.totalorder %s202, %s204
      %p208 = scmp.eq.s32.totalorder %s23, 0
      %p209 = por %p207, %p208
      %p210 = scmp.ne.s32.totalorder %s202, %s204
      %p211 = scmp.eq.s32.totalorder %s28, 3
      %p212 = por %p210, %p211
      %p213 = scmp.ne.s32.totalorder %s204, %s205
      %p214 = scmp.eq.s32.totalorder %s28, 0
      %p215 = por %p213, %p214
      %p216 = scmp.ne.s32.totalorder %s204, %s205
      %p217 = scmp.eq.s32.totalorder %s29, 3
      %p218 = por %p216, %p217
      %p220 = scmp.ne.s32.totalorder %s205, %s219
      %p221 = scmp.eq.s32.totalorder %s29, 0
      %p222 = por %p220, %p221
      %s223 = ssub.s32 %s30, %s42
      %s224 = ssub.s32 %s31, %s38
      %s225 = sor.u32 %s223, %s224
      %p226 = scmp.eq.s32.totalorder %s225, 0
      %s228 = sadd.s32 %s227, 1
      %s229 = scalar_select %p226, %s227, %s228
      %p232 = pneg %p226
      %p233 = scmp.eq.s32.totalorder %s23, 3
      %p234 = por %p232, %p233
      %p235 = scmp.ne.s32.totalorder %s227, %s230
      %p236 = scmp.eq.s32.totalorder %s23, 0
      %p237 = por %p235, %p236
      %p238 = scmp.ne.s32.totalorder %s227, %s230
      %p239 = scmp.eq.s32.totalorder %s28, 3
      %p240 = por %p238, %p239
      %p241 = scmp.ne.s32.totalorder %s230, %s231
      %p242 = scmp.eq.s32.totalorder %s28, 0
      %p243 = por %p241, %p242
      %p244 = scmp.ne.s32.totalorder %s230, %s231
      %p245 = scmp.eq.s32.totalorder %s29, 3
      %p246 = por %p244, %p245
      %p248 = scmp.ne.s32.totalorder %s231, %s247
      %p249 = scmp.eq.s32.totalorder %s29, 0
      %p250 = por %p248, %p249
      %p251 = scmp.le.s32.totalorder 1, %s23
      %p252 = scmp.lt.s32.totalorder %s23, 5
      %p253 = pnand %p251, %p252
      %p254 = pneg %p253
      // Predicated region
      $region9: #{tpu_custom_call.1} parent=5 // pred_check
        _
      $region10: #{tpu_custom_call.1} parent=5 // pred_check_branch
        %256 = sbr.rel (%p253) target = $region12
      $region11: #{tpu_custom_call.1} parent=5 // pred_region
        %s257 = ssub.s32 %s23, 1
        // Predicated region
        $region13: #{tpu_custom_call.1} parent=11 // pred_check
          %p258 = pneg %p152
        $region14: #{tpu_custom_call.1} parent=11 // pred_check_branch
          %260 = sbr.rel (%p258) target = $region16
        $region15: #{tpu_custom_call.1} parent=11 // pred_region
          %s262 = ssub.s32 1152, 1152
          %263 = vsyncadd [#allocation10], %s262
          %s264 = sshll.u32 [#allocation9], 4
          %s265 = int_to_ptr.vmem [resolvable:$true] %s264
          %270 = dma.hbm_to_vmem [thread:$0]  %s3, 1152, %s265, [#allocation10], 128, 128, 8
        $region16: #{tpu_custom_call.1} parent=11 // pred_fallthru
          _
        // Predicated region
        $region17: #{tpu_custom_call.1} parent=11 // pred_check
          %p271 = pneg %p173
        $region18: #{tpu_custom_call.1} parent=11 // pred_check_branch
          %273 = sbr.rel (%p271) target = $region20
        $region19: #{tpu_custom_call.1} parent=11 // pred_region
          _
        $region20: #{tpu_custom_call.1} parent=11 // pred_fallthru
          _
        // Predicated region
        $region21: #{tpu_custom_call.1} parent=11 // pred_check
          %p274 = pneg %p194
        $region22: #{tpu_custom_call.1} parent=11 // pred_check_branch
          %276 = sbr.rel (%p274) target = $region24
        $region23: #{tpu_custom_call.1} parent=11 // pred_region
          _
        $region24: #{tpu_custom_call.1} parent=11 // pred_fallthru
          _
        // Predicated region
        $region25: #{tpu_custom_call.1} parent=11 // pred_check
          %p277 = pneg %p215
        $region26: #{tpu_custom_call.1} parent=11 // pred_check_branch
          %279 = sbr.rel (%p277) target = $region28
        $region27: #{tpu_custom_call.1} parent=11 // pred_region
          _
        $region28: #{tpu_custom_call.1} parent=11 // pred_fallthru
          _
      $region12: #{tpu_custom_call.1} parent=5 // pred_fallthru
        _
      %p280 = scmp.lt.s32.totalorder %s23, 4
      // Predicated region
      $region29: #{tpu_custom_call.1} parent=5 // pred_check
        %p281 = pneg %p280
      $region30: #{tpu_custom_call.1} parent=5 // pred_check_branch
        %283 = sbr.rel (%p281) target = $region32
      $region31: #{tpu_custom_call.1} parent=5 // pred_region
        // Predicated region
        $region33: #{tpu_custom_call.1} parent=31 // pred_check
          %p284 = pneg %p57
        $region34: #{tpu_custom_call.1} parent=31 // pred_check_branch
          %286 = sbr.rel (%p284) target = $region36
        $region35: #{tpu_custom_call.1} parent=31 // pred_region
          %s287 = sand.u32 %s47, 1
          %s288 = scalar_lea.sflag [#allocation4], %s287
          %s289 = sand.u32 %s47, 1
          %s290 = smul.addr %s289, 32
          %s291 = scalar_lea.vmem [#allocation3], %s290
          %s293 = ssub.s32 512, 512
          %294 = vsyncadd %s288, %s293
          %s295 = smul.addr %s30, 8
          %s296 = sadd.s32 %s31, %s295
          %s297 = smul.addr %s296, 128
          %s298 = scalar_lea.hbm %s0, %s297
          %s299 = sshll.u32 %s291, 4
          %s300 = int_to_ptr.vmem [resolvable:$true] %s299
          %305 = dma.hbm_to_vmem [thread:$0]  %s298, 512, %s300, %s288, 256, 128, 8
        $region36: #{tpu_custom_call.1} parent=31 // pred_fallthru
          _
        // Predicated region
        $region37: #{tpu_custom_call.1} parent=31 // pred_check
          %p306 = pneg %p91
        $region38: #{tpu_custom_call.1} parent=31 // pred_check_branch
          %308 = sbr.rel (%p306) target = $region40
        $region39: #{tpu_custom_call.1} parent=31 // pred_region
          %s309 = sand.u32 %s23, 1
          %s310 = scalar_lea.sflag [#allocation7], %s309
          %s311 = sand.u32 %s81, 1
          %s312 = smul.addr %s311, 32
          %s313 = scalar_lea.vmem [#allocation6], %s312
          %s314 = ssub.s32 %s31, 1
          %p315 = scmp.gt.s32.totalorder %s314, 0
          %s316 = scalar_select %p315, %s314, 0
          %s318 = ssub.s32 512, 512
          %319 = vsyncadd %s310, %s318
          %s320 = smul.addr %s30, 8
          %s321 = sadd.s32 %s316, %s320
          %s322 = smul.addr %s321, 128
          %s323 = scalar_lea.hbm %s1, %s322
          %s324 = sshll.u32 %s313, 4
          %s325 = int_to_ptr.vmem [resolvable:$true] %s324
          %330 = dma.hbm_to_vmem [thread:$0]  %s323, 512, %s325, %s310, 256, 128, 8
        $region40: #{tpu_custom_call.1} parent=31 // pred_fallthru
          _
        // Predicated region
        $region41: #{tpu_custom_call.1} parent=31 // pred_check
          %p331 = pneg %p125
        $region42: #{tpu_custom_call.1} parent=31 // pred_check_branch
          %333 = sbr.rel (%p331) target = $region44
        $region43: #{tpu_custom_call.1} parent=31 // pred_region
          %s334 = sand.u32 %s23, 1
          %s335 = scalar_lea.sflag [#allocation7], %s334
          %s336 = sand.u32 %s115, 1
          %s337 = smul.addr %s336, 32
          %s338 = scalar_lea.vmem [#allocation8], %s337
          %s339 = sadd.s32 %s31, 1
          %p340 = scmp.lt.s32.totalorder %s339, 1
          %s341 = scalar_select %p340, %s339, 1
          %s343 = ssub.s32 512, 512
          %344 = vsyncadd %s335, %s343
          %s345 = smul.addr %s30, 8
          %s346 = sadd.s32 %s341, %s345
          %s347 = smul.addr %s346, 128
          %s348 = scalar_lea.hbm %s2, %s347
          %s349 = sshll.u32 %s338, 4
          %s350 = int_to_ptr.vmem [resolvable:$true] %s349
          %355 = dma.hbm_to_vmem [thread:$0]  %s348, 512, %s350, %s335, 256, 128, 8
        $region44: #{tpu_custom_call.1} parent=31 // pred_fallthru
          _
      $region32: #{tpu_custom_call.1} parent=5 // pred_fallthru
        _
      %p356 = scmp.le.s32.totalorder 1, %s23
      %p357 = scmp.lt.s32.totalorder %s23, 5
      %p358 = pnand %p356, %p357
      %p359 = pneg %p358
      // Predicated region
      $region45: #{tpu_custom_call.1} parent=5 // pred_check
        _
      $region46: #{tpu_custom_call.1} parent=5 // pred_check_branch
        %361 = sbr.rel (%p358) target = $region48
      $region47: #{tpu_custom_call.1} parent=5 // pred_region
        %s362 = ssub.s32 %s23, 1
        %s363 = sand.u32 %s50, 1
        %s364 = scalar_lea.sflag [#allocation4], %s363
        %s365 = sand.u32 %s50, 1
        %s366 = smul.addr %s365, 32
        %s367 = scalar_lea.vmem [#allocation3], %s366
        // Predicated region
        $region49: #{tpu_custom_call.1} parent=47 // pred_check
          %p368 = pneg %p63
        $region50: #{tpu_custom_call.1} parent=47 // pred_check_branch
          %370 = sbr.rel (%p368) target = $region52
        $region51: #{tpu_custom_call.1} parent=47 // pred_region
          %371 = dma.done %s364, 512
        $region52: #{tpu_custom_call.1} parent=47 // pred_fallthru
          _
        %s372 = sand.u32 %s28, 1
        %s373 = scalar_lea.sflag [#allocation7], %s372
        %s374 = sand.u32 %s84, 1
        %s375 = smul.addr %s374, 32
        %s376 = scalar_lea.vmem [#allocation6], %s375
        // Predicated region
        $region53: #{tpu_custom_call.1} parent=47 // pred_check
          %p377 = pneg %p97
        $region54: #{tpu_custom_call.1} parent=47 // pred_check_branch
          %379 = sbr.rel (%p377) target = $region56
        $region55: #{tpu_custom_call.1} parent=47 // pred_region
          %380 = dma.done %s373, 512
        $region56: #{tpu_custom_call.1} parent=47 // pred_fallthru
          _
        %s381 = sand.u32 %s28, 1
        %s382 = scalar_lea.sflag [#allocation7], %s381
        %s383 = sand.u32 %s118, 1
        %s384 = smul.addr %s383, 32
        %s385 = scalar_lea.vmem [#allocation8], %s384
        // Predicated region
        $region57: #{tpu_custom_call.1} parent=47 // pred_check
          %p386 = pneg %p131
        $region58: #{tpu_custom_call.1} parent=47 // pred_check_branch
          %388 = sbr.rel (%p386) target = $region60
        $region59: #{tpu_custom_call.1} parent=47 // pred_region
          %389 = dma.done %s382, 512
        $region60: #{tpu_custom_call.1} parent=47 // pred_fallthru
          _
        // Predicated region
        $region61: #{tpu_custom_call.1} parent=47 // pred_check
          %p390 = pneg %p152
        $region62: #{tpu_custom_call.1} parent=47 // pred_check_branch
          %392 = sbr.rel (%p390) target = $region64
        $region63: #{tpu_custom_call.1} parent=47 // pred_region
          %393 = dma.done [#allocation10], 1152
        $region64: #{tpu_custom_call.1} parent=47 // pred_fallthru
          _
        %s394 = sand.u32 %s50, 1
        %s395 = scalar_lea.sflag [#allocation4], %s394
        %s396 = sand.u32 %s50, 1
        %s397 = smul.addr %s396, 32
        %s398 = scalar_lea.vmem [#allocation3], %s397
        %p399 = pneg %p63
        %p400 = pneg %p60
        %s401 = sand.u32 %s28, 1
        %s402 = scalar_lea.sflag [#allocation7], %s401
        %s403 = sand.u32 %s84, 1
        %s404 = smul.addr %s403, 32
        %s405 = scalar_lea.vmem [#allocation6], %s404
        %p406 = pneg %p97
        %p407 = pneg %p94
        %s408 = sand.u32 %s28, 1
        %s409 = scalar_lea.sflag [#allocation7], %s408
        %s410 = sand.u32 %s118, 1
        %s411 = smul.addr %s410, 32
        %s412 = scalar_lea.vmem [#allocation8], %s411
        %p413 = pneg %p131
        %p414 = pneg %p128
        %p415 = pneg %p152
        %p416 = pneg %p149
        %p417 = pneg %p173
        %p418 = pneg %p170
        %p419 = pneg %p194
        %p420 = pneg %p191
        %p421 = pneg %p215
        %p422 = pneg %p212
        %p423 = pneg %p243
        %p424 = pneg %p240
        %s425 = sand.u32 %s230, 1
        %s426 = scalar_lea.sflag [#allocation5], %s425
        %s427 = sand.u32 %s230, 1
        %s428 = smul.addr %s427, 16
        %s429 = scalar_lea.vmem [#allocation11], %s428
        %s430 = ssub.s32 %s33, 1
        %p431 = scmp.gt.s32.totalorder %s430, 0
        %s432 = scalar_select %p431, %s430, 0
        %s433 = sadd.s32 %s33, 1
        %p434 = scmp.lt.s32.totalorder %s433, 1
        %s435 = scalar_select %p434, %s433, 1
        %vm436 = vcmask 7168
        %437 = vst.msk [vmem:[#allocation2] sm:$0xff] %vm436, 0.0
        %438 = vst.msk [vmem:[#allocation2 + $0x10] sm:$0xff] %vm436, 0.0
        %439 = vst.msk [vmem:[#allocation2 + $0x20] sm:$0xff] %vm436, 0.0
        %440 = vst.msk [vmem:[#allocation2 + $0x30] sm:$0xff] %vm436, 0.0
        %vm441 = vcmask 277768
        %442 = vst.msk [vmem:[#allocation2 + $0x8] sm:$0xff] %vm441, 0.0
        %443 = vst.msk [vmem:[#allocation2 + $0x18] sm:$0xff] %vm441, 0.0
        %444 = vst.msk [vmem:[#allocation2 + $0x28] sm:$0xff] %vm441, 0.0
        %445 = vst.msk [vmem:[#allocation2 + $0x38] sm:$0xff] %vm441, 0.0
        %v446 = vld [vmem:[%s367] sm:$0xff]
        %v447 = vld [vmem:[%s367 + $0x8] sm:$0xff]
        %v448 = vld [vmem:[%s367 + $0x10] sm:$0xff]
        %v449 = vld [vmem:[%s367 + $0x18] sm:$0xff]
        %454 = vrot.lane.b32.xlu0 %v446, 17
        %v455 = vpop.permute.xlu0 %454
        %456 = vrot.lane.b32.xlu0 %v447, 17
        %v457 = vpop.permute.xlu0 %456
        %458 = vrot.lane.b32.xlu0 %v448, 17
        %v459 = vpop.permute.xlu0 %458
        %460 = vrot.lane.b32.xlu0 %v449, 17
        %v461 = vpop.permute.xlu0 %460
        %vm466 = vcmask 1047688
        %467 = vst.msk [vmem:[#allocation2] sm:$0xff] %vm466, %v455
        %vm468 = vcmask 138240
        %469 = vst.msk [vmem:[#allocation2 + $0x8] sm:$0xff] %vm468, %v455
        %470 = vst.msk [vmem:[#allocation2 + $0x10] sm:$0xff] %vm466, %v457
        %471 = vst.msk [vmem:[#allocation2 + $0x18] sm:$0xff] %vm468, %v457
        %472 = vst.msk [vmem:[#allocation2 + $0x20] sm:$0xff] %vm466, %v459
        %473 = vst.msk [vmem:[#allocation2 + $0x28] sm:$0xff] %vm468, %v459
        %474 = vst.msk [vmem:[#allocation2 + $0x30] sm:$0xff] %vm466, %v461
        %475 = vst.msk [vmem:[#allocation2 + $0x38] sm:$0xff] %vm468, %v461
        %p476 = scmp.eq.s32.totalorder %s33, 0
        // Predicated region
        $region65: #{tpu_custom_call.1} parent=47 // pred_check
          %p477 = pneg %p476
        $region66: #{tpu_custom_call.1} parent=47 // pred_check_branch
          %479 = sbr.rel (%p477) target = $region68
        $region67: #{tpu_custom_call.1} parent=47 // pred_region
          %vm480 = vcmask 138248
          %481 = vst.msk [vmem:[#allocation2] sm:$0xff] %vm480, 0.0
          %482 = vst.msk [vmem:[#allocation2 + $0x10] sm:$0xff] %vm480, 0.0
          %483 = vst.msk [vmem:[#allocation2 + $0x20] sm:$0xff] %vm480, 0.0
          %484 = vst.msk [vmem:[#allocation2 + $0x30] sm:$0xff] %vm480, 0.0
        $region68: #{tpu_custom_call.1} parent=47 // pred_fallthru
          _
        %p485 = scmp.gt.s32.totalorder %s33, 0
        // Predicated region
        $region69: #{tpu_custom_call.1} parent=47 // pred_check
          %p486 = pneg %p485
        $region70: #{tpu_custom_call.1} parent=47 // pred_check_branch
          %488 = sbr.rel (%p486) target = $region72
        $region71: #{tpu_custom_call.1} parent=47 // pred_region
          %v489 = vld [vmem:[%s376] sm:$0xff]
          %v490 = vld [vmem:[%s376 + $0x8] sm:$0xff]
          %v491 = vld [vmem:[%s376 + $0x10] sm:$0xff]
          %v492 = vld [vmem:[%s376 + $0x18] sm:$0xff]
          %497 = vrot.lane.b32.xlu0 %v489, 17
          %v498 = vpop.permute.xlu0 %497
          %499 = vrot.lane.b32.xlu0 %v490, 17
          %v500 = vpop.permute.xlu0 %499
          %501 = vrot.lane.b32.xlu0 %v491, 17
          %v502 = vpop.permute.xlu0 %501
          %503 = vrot.lane.b32.xlu0 %v492, 17
          %v504 = vpop.permute.xlu0 %503
          %vm509 = vcmask 138248
          %510 = vst.msk [vmem:[#allocation2] sm:$0xff] %vm509, %v498
          %511 = vst.msk [vmem:[#allocation2 + $0x10] sm:$0xff] %vm509, %v500
          %512 = vst.msk [vmem:[#allocation2 + $0x20] sm:$0xff] %vm509, %v502
          %513 = vst.msk [vmem:[#allocation2 + $0x30] sm:$0xff] %vm509, %v504
        $region72: #{tpu_custom_call.1} parent=47 // pred_fallthru
          _
        %p514 = scmp.eq.s32.totalorder %s33, 1
        // Predicated region
        $region73: #{tpu_custom_call.1} parent=47 // pred_check
          %p515 = pneg %p514
        $region74: #{tpu_custom_call.1} parent=47 // pred_check_branch
          %517 = sbr.rel (%p515) target = $region76
        $region75: #{tpu_custom_call.1} parent=47 // pred_region
          %vm518 = vcmask 269448
          %519 = vst.msk [vmem:[#allocation2 + $0x8] sm:$0xff] %vm518, 0.0
          %520 = vst.msk [vmem:[#allocation2 + $0x18] sm:$0xff] %vm518, 0.0
          %521 = vst.msk [vmem:[#allocation2 + $0x28] sm:$0xff] %vm518, 0.0
          %522 = vst.msk [vmem:[#allocation2 + $0x38] sm:$0xff] %vm518, 0.0
        $region76: #{tpu_custom_call.1} parent=47 // pred_fallthru
          _
        %p523 = scmp.lt.s32.totalorder %s33, 1
        // Predicated region
        $region77: #{tpu_custom_call.1} parent=47 // pred_check
          %p524 = pneg %p523
        $region78: #{tpu_custom_call.1} parent=47 // pred_check_branch
          %526 = sbr.rel (%p524) target = $region80
        $region79: #{tpu_custom_call.1} parent=47 // pred_region
          %v527 = vld [vmem:[%s385] sm:$0xff]
          %v528 = vld [vmem:[%s385 + $0x8] sm:$0xff]
          %v529 = vld [vmem:[%s385 + $0x10] sm:$0xff]
          %v530 = vld [vmem:[%s385 + $0x18] sm:$0xff]
          %535 = vrot.lane.b32.xlu0 %v527, 17
          %v536 = vpop.permute.xlu0 %535
          %537 = vrot.lane.b32.xlu0 %v528, 17
          %v538 = vpop.permute.xlu0 %537
          %539 = vrot.lane.b32.xlu0 %v529, 17
          %v540 = vpop.permute.xlu0 %539
          %541 = vrot.lane.b32.xlu0 %v530, 17
          %v542 = vpop.permute.xlu0 %541
          %vm547 = vcmask 269448
          %548 = vst.msk [vmem:[#allocation2 + $0x8] sm:$0xff] %vm547, %v536
          %549 = vst.msk [vmem:[#allocation2 + $0x18] sm:$0xff] %vm547, %v538
          %550 = vst.msk [vmem:[#allocation2 + $0x28] sm:$0xff] %vm547, %v540
          %551 = vst.msk [vmem:[#allocation2 + $0x38] sm:$0xff] %vm547, %v542
        $region80: #{tpu_custom_call.1} parent=47 // pred_fallthru
          _
        %v552 = vlaneseq
        %v553 = vand.u32 %v552, 127
        %vm554 = vcmp.lt.s32.totalorder %v553, 0
        %v555 = vsub.s32 0, %v553
        %v556 = vsel %vm554, %v555, %v553
        %v557 = vshrl.u32 %v556, 4
        %v558 = vand.u32 %v556, 15
        %v559 = vsub.s32 0, %v558
        %v560 = vsel %vm554, %v559, %v558
        %vm561 = vcmp.ne.s32.totalorder %v560, 0
        %vm562 = vcmp.lt.s32.totalorder %v560, 0
        %vm563 = vmand %vm562, %vm561
        %v564 = vadd.s32 %v560, 16
        %v565 = vsel %vm563, %v564, %v560
        %vm566 = vcmp.ne.s32.totalorder %v565, 0
        %vm567 = vcmp.ne.s32.totalorder %v565, 15
        %v568 = vld [vmem:[#allocation2] sm:$0xff]
        %v569 = vld [vmem:[#allocation2 + $0x10] sm:$0xff]
        %v570 = vld [vmem:[#allocation2 + $0x20] sm:$0xff]
        %v571 = vld [vmem:[#allocation2 + $0x30] sm:$0xff]
        %v572 = vsel %vm566, 1, 0
        %vm573 = vcmp.eq.s32.totalorder %v572, 1
        %v574 = vsel %vm573, %v568, 0.0
        %v575 = vsel %vm573, %v569, 0.0
        %v576 = vsel %vm573, %v570, 0.0
        %v577 = vsel %vm573, %v571, 0.0
        %v578 = vld [vmem:[#allocation9] sm:$0xff]
        %v579 = vld [vmem:[#allocation2 + $0x8] sm:$0xff]
        %v580 = vld [vmem:[#allocation2 + $0x18] sm:$0xff]
        %v581 = vld [vmem:[#allocation2 + $0x28] sm:$0xff]
        %v582 = vld [vmem:[#allocation2 + $0x38] sm:$0xff]
        %s583 = scalar_lea.vmem [#allocation9], 8
        %v584 = vld [vmem:[%s583] sm:$0xff]
        %593 = vrot.lane.b32.xlu0 %v568, 127
        %v594 = vpop.permute.xlu0 %593
        %595 = vrot.lane.b32.xlu0 %v579, 127
        %v596 = vpop.permute.xlu0 %595
        %597 = vrot.lane.b32.xlu0 %v569, 127
        %v598 = vpop.permute.xlu0 %597
        %599 = vrot.lane.b32.xlu0 %v580, 127
        %v600 = vpop.permute.xlu0 %599
        %601 = vrot.lane.b32.xlu0 %v570, 127
        %v602 = vpop.permute.xlu0 %601
        %603 = vrot.lane.b32.xlu0 %v581, 127
        %v604 = vpop.permute.xlu0 %603
        %605 = vrot.lane.b32.xlu0 %v571, 127
        %v606 = vpop.permute.xlu0 %605
        %607 = vrot.lane.b32.xlu0 %v582, 127
        %v608 = vpop.permute.xlu0 %607
        %vm609 = vcmask 1039360
        %v610 = vsel %vm609, %v594, %v596
        %v611 = vsel %vm609, %v598, %v600
        %v612 = vsel %vm609, %v602, %v604
        %v613 = vsel %vm609, %v606, %v608
        %vm618 = vcmask 261120
        %v620 = vsel %vm618, %v584, 0
        %622 = vmatprep.subr.mxu0 0.0
        %623 = vmatpush1.msra.mxu0 %v610
        %624 = vmatprep.subr.mxu0 0.0
        %625 = vmatpush1.msra.mxu0 %v611
        %626 = vmatprep.subr.mxu0 0.0
        %627 = vmatpush1.msra.mxu0 %v612
        %628 = vmatprep.subr.mxu0 0.0
        %629 = vmatpush1.msra.mxu0 %v613
        %630 = vmatprep.subr.mxu0 0.0
        %631 = vmatpush1.msra.mxu0 0.0
        %632 = vmatprep.subr.mxu0 0.0
        %633 = vmatpush1.msra.mxu0 0.0
        %634 = vmatprep.subr.mxu0 0.0
        %635 = vmatpush1.msra.mxu0 0.0
        %636 = vmatprep.subr.mxu0 0.0
        %637 = vmatpush1.msra.mxu0 0.0
        %638 = vmatprep.subr.mxu0 0.0
        %639 = vmatpush1.msra.mxu0 0.0
        %640 = vmatprep.subr.mxu0 0.0
        %641 = vmatpush1.msra.mxu0 0.0
        %642 = vmatprep.subr.mxu0 0.0
        %643 = vmatpush1.msra.mxu0 0.0
        %644 = vmatprep.subr.mxu0 0.0
        %645 = vmatpush1.msra.mxu0 0.0
        %646 = vmatprep.subr.mxu0 0.0
        %647 = vmatpush1.msra.mxu0 0.0
        %648 = vmatprep.subr.mxu0 0.0
        %649 = vmatpush1.msra.mxu0 0.0
        %650 = vmatprep.subr.mxu0 0.0
        %651 = vmatpush1.msra.mxu0 0.0
        %652 = vmatprep.subr.mxu0 0.0
        %653 = vmatpush1.msra.mxu0 0.0
        %654 = vmatprep.subr.mxu0 0.0
        %655 = vmatpush1.msra.mxu0 0.0
        %656 = vmatprep.subr.mxu0 0.0
        %657 = vmatpush1.msra.mxu0 0.0
        %658 = vmatprep.subr.mxu0 0.0
        %659 = vmatpush1.msra.mxu0 0.0
        %660 = vmatprep.subr.mxu0 0.0
        %661 = vmatpush1.msra.mxu0 0.0
        %662 = vmatprep.subr.mxu0 0.0
        %663 = vmatpush1.msra.mxu0 0.0
        %664 = vmatprep.subr.mxu0 0.0
        %665 = vmatpush1.msra.mxu0 0.0
        %666 = vmatprep.subr.mxu0 0.0
        %667 = vmatpush1.msra.mxu0 0.0
        %668 = vmatprep.subr.mxu0 0.0
        %669 = vmatpush1.msra.mxu0 0.0
        %670 = vmatprep.subr.mxu0 0.0
        %671 = vmatpush1.msra.mxu0 0.0
        %672 = vmatprep.subr.mxu0 0.0
        %673 = vmatpush1.msra.mxu0 0.0
        %674 = vmatprep.subr.mxu0 0.0
        %675 = vmatpush1.msra.mxu0 0.0
        %676 = vmatprep.subr.mxu0 0.0
        %677 = vmatpush1.msra.mxu0 0.0
        %678 = vmatprep.subr.mxu0 0.0
        %679 = vmatpush1.msra.mxu0 0.0
        %680 = vmatprep.subr.mxu0 0.0
        %681 = vmatpush1.msra.mxu0 0.0
        %682 = vmatprep.subr.mxu0 0.0
        %683 = vmatpush1.msra.mxu0 0.0
        %684 = vmatprep.subr.mxu0 0.0
        %685 = vmatpush1.msra.mxu0 0.0
        %686 = vmatprep.mubr.f32.mxu0 0.0
        %687 = vmatmul.mubr.f32.gmra.mrb[0].mxu0 %v620
        %v688 = vpop.f32.mrb[0].mxu0
        %v689 = vadd.f32 0.0, %v688
        %v690 = vpop.f32.mrb[0].mxu0
        %691 = vdwg.mxu0
        %v693 = vsel %vm618, %v578, 0
        %695 = vmatprep.subr.mxu0 0.0
        %696 = vmatpush1.msra.mxu0 %v574
        %697 = vmatprep.subr.mxu0 0.0
        %698 = vmatpush1.msra.mxu0 %v575
        %699 = vmatprep.subr.mxu0 0.0
        %700 = vmatpush1.msra.mxu0 %v576
        %701 = vmatprep.subr.mxu0 0.0
        %702 = vmatpush1.msra.mxu0 %v577
        %703 = vmatprep.subr.mxu0 0.0
        %704 = vmatpush1.msra.mxu0 0.0
        %705 = vmatprep.subr.mxu0 0.0
        %706 = vmatpush1.msra.mxu0 0.0
        %707 = vmatprep.subr.mxu0 0.0
        %708 = vmatpush1.msra.mxu0 0.0
        %709 = vmatprep.subr.mxu0 0.0
        %710 = vmatpush1.msra.mxu0 0.0
        %711 = vmatprep.subr.mxu0 0.0
        %712 = vmatpush1.msra.mxu0 0.0
        %713 = vmatprep.subr.mxu0 0.0
        %714 = vmatpush1.msra.mxu0 0.0
        %715 = vmatprep.subr.mxu0 0.0
        %716 = vmatpush1.msra.mxu0 0.0
        %717 = vmatprep.subr.mxu0 0.0
        %718 = vmatpush1.msra.mxu0 0.0
        %719 = vmatprep.subr.mxu0 0.0
        %720 = vmatpush1.msra.mxu0 0.0
        %721 = vmatprep.subr.mxu0 0.0
        %722 = vmatpush1.msra.mxu0 0.0
        %723 = vmatprep.subr.mxu0 0.0
        %724 = vmatpush1.msra.mxu0 0.0
        %725 = vmatprep.subr.mxu0 0.0
        %726 = vmatpush1.msra.mxu0 0.0
        %727 = vmatprep.subr.mxu0 0.0
        %728 = vmatpush1.msra.mxu0 0.0
        %729 = vmatprep.subr.mxu0 0.0
        %730 = vmatpush1.msra.mxu0 0.0
        %731 = vmatprep.subr.mxu0 0.0
        %732 = vmatpush1.msra.mxu0 0.0
        %733 = vmatprep.subr.mxu0 0.0
        %734 = vmatpush1.msra.mxu0 0.0
        %735 = vmatprep.subr.mxu0 0.0
        %736 = vmatpush1.msra.mxu0 0.0
        %737 = vmatprep.subr.mxu0 0.0
        %738 = vmatpush1.msra.mxu0 0.0
        %739 = vmatprep.subr.mxu0 0.0
        %740 = vmatpush1.msra.mxu0 0.0
        %741 = vmatprep.subr.mxu0 0.0
        %742 = vmatpush1.msra.mxu0 0.0
        %743 = vmatprep.subr.mxu0 0.0
        %744 = vmatpush1.msra.mxu0 0.0
        %745 = vmatprep.subr.mxu0 0.0
        %746 = vmatpush1.msra.mxu0 0.0
        %747 = vmatprep.subr.mxu0 0.0
        %748 = vmatpush1.msra.mxu0 0.0
        %749 = vmatprep.subr.mxu0 0.0
        %750 = vmatpush1.msra.mxu0 0.0
        %751 = vmatprep.subr.mxu0 0.0
        %752 = vmatpush1.msra.mxu0 0.0
        %753 = vmatprep.subr.mxu0 0.0
        %754 = vmatpush1.msra.mxu0 0.0
        %755 = vmatprep.subr.mxu0 0.0
        %756 = vmatpush1.msra.mxu0 0.0
        %757 = vmatprep.subr.mxu0 0.0
        %758 = vmatpush1.msra.mxu0 0.0
        %759 = vmatprep.mubr.f32.mxu0 0.0
        %760 = vmatmul.mubr.f32.gmra.mrb[0].mxu0 %v693
        %v761 = vpop.f32.mrb[0].mxu0
        %v762 = vadd.f32 %v689, %v761
        %v763 = vpop.f32.mrb[0].mxu0
        %764 = vdwg.mxu0
        %v765 = vsel %vm567, 1, 0
        %vm766 = vcmp.eq.s32.totalorder %v765, 1
        %767 = vrot.lane.b32.xlu0 %v568, 126
        %v768 = vpop.permute.xlu0 %767
        %769 = vrot.lane.b32.xlu0 %v579, 126
        %v770 = vpop.permute.xlu0 %769
        %771 = vrot.lane.b32.xlu0 %v569, 126
        %v772 = vpop.permute.xlu0 %771
        %773 = vrot.lane.b32.xlu0 %v580, 126
        %v774 = vpop.permute.xlu0 %773
        %775 = vrot.lane.b32.xlu0 %v570, 126
        %v776 = vpop.permute.xlu0 %775
        %777 = vrot.lane.b32.xlu0 %v581, 126
        %v778 = vpop.permute.xlu0 %777
        %779 = vrot.lane.b32.xlu0 %v571, 126
        %v780 = vpop.permute.xlu0 %779
        %781 = vrot.lane.b32.xlu0 %v582, 126
        %v782 = vpop.permute.xlu0 %781
        %vm783 = vcmask 1031168
        %v784 = vsel %vm783, %v768, %v770
        %v785 = vsel %vm783, %v772, %v774
        %v786 = vsel %vm783, %v776, %v778
        %v787 = vsel %vm783, %v780, %v782
        %v792 = vsel %vm766, %v784, 0.0
        %v793 = vsel %vm766, %v785, 0.0
        %v794 = vsel %vm766, %v786, 0.0
        %v795 = vsel %vm766, %v787, 0.0
        %s796 = scalar_lea.vmem [#allocation9], 16
        %v797 = vld [vmem:[%s796] sm:$0xff]
        %v799 = vsel %vm618, %v797, 0
        %801 = vmatprep.subr.mxu0 0.0
        %802 = vmatpush1.msra.mxu0 %v792
        %803 = vmatprep.subr.mxu0 0.0
        %804 = vmatpush1.msra.mxu0 %v793
        %805 = vmatprep.subr.mxu0 0.0
        %806 = vmatpush1.msra.mxu0 %v794
        %807 = vmatprep.subr.mxu0 0.0
        %808 = vmatpush1.msra.mxu0 %v795
        %809 = vmatprep.subr.mxu0 0.0
        %810 = vmatpush1.msra.mxu0 0.0
        %811 = vmatprep.subr.mxu0 0.0
        %812 = vmatpush1.msra.mxu0 0.0
        %813 = vmatprep.subr.mxu0 0.0
        %814 = vmatpush1.msra.mxu0 0.0
        %815 = vmatprep.subr.mxu0 0.0
        %816 = vmatpush1.msra.mxu0 0.0
        %817 = vmatprep.subr.mxu0 0.0
        %818 = vmatpush1.msra.mxu0 0.0
        %819 = vmatprep.subr.mxu0 0.0
        %820 = vmatpush1.msra.mxu0 0.0
        %821 = vmatprep.subr.mxu0 0.0
        %822 = vmatpush1.msra.mxu0 0.0
        %823 = vmatprep.subr.mxu0 0.0
        %824 = vmatpush1.msra.mxu0 0.0
        %825 = vmatprep.subr.mxu0 0.0
        %826 = vmatpush1.msra.mxu0 0.0
        %827 = vmatprep.subr.mxu0 0.0
        %828 = vmatpush1.msra.mxu0 0.0
        %829 = vmatprep.subr.mxu0 0.0
        %830 = vmatpush1.msra.mxu0 0.0
        %831 = vmatprep.subr.mxu0 0.0
        %832 = vmatpush1.msra.mxu0 0.0
        %833 = vmatprep.subr.mxu0 0.0
        %834 = vmatpush1.msra.mxu0 0.0
        %835 = vmatprep.subr.mxu0 0.0
        %836 = vmatpush1.msra.mxu0 0.0
        %837 = vmatprep.subr.mxu0 0.0
        %838 = vmatpush1.msra.mxu0 0.0
        %839 = vmatprep.subr.mxu0 0.0
        %840 = vmatpush1.msra.mxu0 0.0
        %841 = vmatprep.subr.mxu0 0.0
        %842 = vmatpush1.msra.mxu0 0.0
        %843 = vmatprep.subr.mxu0 0.0
        %844 = vmatpush1.msra.mxu0 0.0
        %845 = vmatprep.subr.mxu0 0.0
        %846 = vmatpush1.msra.mxu0 0.0
        %847 = vmatprep.subr.mxu0 0.0
        %848 = vmatpush1.msra.mxu0 0.0
        %849 = vmatprep.subr.mxu0 0.0
        %850 = vmatpush1.msra.mxu0 0.0
        %851 = vmatprep.subr.mxu0 0.0
        %852 = vmatpush1.msra.mxu0 0.0
        %853 = vmatprep.subr.mxu0 0.0
        %854 = vmatpush1.msra.mxu0 0.0
        %855 = vmatprep.subr.mxu0 0.0
        %856 = vmatpush1.msra.mxu0 0.0
        %857 = vmatprep.subr.mxu0 0.0
        %858 = vmatpush1.msra.mxu0 0.0
        %859 = vmatprep.subr.mxu0 0.0
        %860 = vmatpush1.msra.mxu0 0.0
        %861 = vmatprep.subr.mxu0 0.0
        %862 = vmatpush1.msra.mxu0 0.0
        %863 = vmatprep.subr.mxu0 0.0
        %864 = vmatpush1.msra.mxu0 0.0
        %865 = vmatprep.mubr.f32.mxu0 0.0
        %866 = vmatmul.mubr.f32.gmra.mrb[0].mxu0 %v799
        %v867 = vpop.f32.mrb[0].mxu0
        %v868 = vadd.f32 0.0, %v867
        %v869 = vpop.f32.mrb[0].mxu0
        %870 = vdwg.mxu0
        %v871 = vadd.f32 %v762, %v868
        %872 = vrot.lane.b32.xlu0 %v568, 112
        %v873 = vpop.permute.xlu0 %872
        %874 = vrot.lane.b32.xlu0 %v579, 112
        %v875 = vpop.permute.xlu0 %874
        %876 = vrot.lane.b32.xlu0 %v569, 112
        %v877 = vpop.permute.xlu0 %876
        %878 = vrot.lane.b32.xlu0 %v580, 112
        %v879 = vpop.permute.xlu0 %878
        %880 = vrot.lane.b32.xlu0 %v570, 112
        %v881 = vpop.permute.xlu0 %880
        %882 = vrot.lane.b32.xlu0 %v581, 112
        %v883 = vpop.permute.xlu0 %882
        %884 = vrot.lane.b32.xlu0 %v571, 112
        %v885 = vpop.permute.xlu0 %884
        %886 = vrot.lane.b32.xlu0 %v582, 112
        %v887 = vpop.permute.xlu0 %886
        %vm888 = vcmask 916480
        %v889 = vsel %vm888, %v873, %v875
        %v890 = vsel %vm888, %v877, %v879
        %v891 = vsel %vm888, %v881, %v883
        %v892 = vsel %vm888, %v885, %v887
        %v897 = vsel %vm573, %v889, 0.0
        %v898 = vsel %vm573, %v890, 0.0
        %v899 = vsel %vm573, %v891, 0.0
        %v900 = vsel %vm573, %v892, 0.0
        %s901 = scalar_lea.vmem [#allocation9], 24
        %v902 = vld [vmem:[%s901] sm:$0xff]
        %v904 = vsel %vm618, %v902, 0
        %906 = vmatprep.subr.mxu0 0.0
        %907 = vmatpush1.msra.mxu0 %v897
        %908 = vmatprep.subr.mxu0 0.0
        %909 = vmatpush1.msra.mxu0 %v898
        %910 = vmatprep.subr.mxu0 0.0
        %911 = vmatpush1.msra.mxu0 %v899
        %912 = vmatprep.subr.mxu0 0.0
        %913 = vmatpush1.msra.mxu0 %v900
        %914 = vmatprep.subr.mxu0 0.0
        %915 = vmatpush1.msra.mxu0 0.0
        %916 = vmatprep.subr.mxu0 0.0
        %917 = vmatpush1.msra.mxu0 0.0
        %918 = vmatprep.subr.mxu0 0.0
        %919 = vmatpush1.msra.mxu0 0.0
        %920 = vmatprep.subr.mxu0 0.0
        %921 = vmatpush1.msra.mxu0 0.0
        %922 = vmatprep.subr.mxu0 0.0
        %923 = vmatpush1.msra.mxu0 0.0
        %924 = vmatprep.subr.mxu0 0.0
        %925 = vmatpush1.msra.mxu0 0.0
        %926 = vmatprep.subr.mxu0 0.0
        %927 = vmatpush1.msra.mxu0 0.0
        %928 = vmatprep.subr.mxu0 0.0
        %929 = vmatpush1.msra.mxu0 0.0
        %930 = vmatprep.subr.mxu0 0.0
        %931 = vmatpush1.msra.mxu0 0.0
        %932 = vmatprep.subr.mxu0 0.0
        %933 = vmatpush1.msra.mxu0 0.0
        %934 = vmatprep.subr.mxu0 0.0
        %935 = vmatpush1.msra.mxu0 0.0
        %936 = vmatprep.subr.mxu0 0.0
        %937 = vmatpush1.msra.mxu0 0.0
        %938 = vmatprep.subr.mxu0 0.0
        %939 = vmatpush1.msra.mxu0 0.0
        %940 = vmatprep.subr.mxu0 0.0
        %941 = vmatpush1.msra.mxu0 0.0
        %942 = vmatprep.subr.mxu0 0.0
        %943 = vmatpush1.msra.mxu0 0.0
        %944 = vmatprep.subr.mxu0 0.0
        %945 = vmatpush1.msra.mxu0 0.0
        %946 = vmatprep.subr.mxu0 0.0
        %947 = vmatpush1.msra.mxu0 0.0
        %948 = vmatprep.subr.mxu0 0.0
        %949 = vmatpush1.msra.mxu0 0.0
        %950 = vmatprep.subr.mxu0 0.0
        %951 = vmatpush1.msra.mxu0 0.0
        %952 = vmatprep.subr.mxu0 0.0
        %953 = vmatpush1.msra.mxu0 0.0
        %954 = vmatprep.subr.mxu0 0.0
        %955 = vmatpush1.msra.mxu0 0.0
        %956 = vmatprep.subr.mxu0 0.0
        %957 = vmatpush1.msra.mxu0 0.0
        %958 = vmatprep.subr.mxu0 0.0
        %959 = vmatpush1.msra.mxu0 0.0
        %960 = vmatprep.subr.mxu0 0.0
        %961 = vmatpush1.msra.mxu0 0.0
        %962 = vmatprep.subr.mxu0 0.0
        %963 = vmatpush1.msra.mxu0 0.0
        %964 = vmatprep.subr.mxu0 0.0
        %965 = vmatpush1.msra.mxu0 0.0
        %966 = vmatprep.subr.mxu0 0.0
        %967 = vmatpush1.msra.mxu0 0.0
        %968 = vmatprep.subr.mxu0 0.0
        %969 = vmatpush1.msra.mxu0 0.0
        %970 = vmatprep.mubr.f32.mxu0 0.0
        %971 = vmatmul.mubr.f32.gmra.mrb[0].mxu0 %v904
        %v972 = vpop.f32.mrb[0].mxu0
        %v973 = vadd.f32 0.0, %v972
        %v974 = vpop.f32.mrb[0].mxu0
        %975 = vdwg.mxu0
        %v976 = vadd.f32 %v871, %v973
        %s977 = scalar_lea.vmem [#allocation9], 32
        %v978 = vld [vmem:[%s977] sm:$0xff]
        %979 = vrot.lane.b32.xlu0 %v568, 111
        %v980 = vpop.permute.xlu0 %979
        %981 = vrot.lane.b32.xlu0 %v579, 111
        %v982 = vpop.permute.xlu0 %981
        %983 = vrot.lane.b32.xlu0 %v569, 111
        %v984 = vpop.permute.xlu0 %983
        %985 = vrot.lane.b32.xlu0 %v580, 111
        %v986 = vpop.permute.xlu0 %985
        %987 = vrot.lane.b32.xlu0 %v570, 111
        %v988 = vpop.permute.xlu0 %987
        %989 = vrot.lane.b32.xlu0 %v581, 111
        %v990 = vpop.permute.xlu0 %989
        %991 = vrot.lane.b32.xlu0 %v571, 111
        %v992 = vpop.permute.xlu0 %991
        %993 = vrot.lane.b32.xlu0 %v582, 111
        %v994 = vpop.permute.xlu0 %993
        %vm995 = vcmask 908288
        %v996 = vsel %vm995, %v980, %v982
        %v997 = vsel %vm995, %v984, %v986
        %v998 = vsel %vm995, %v988, %v990
        %v999 = vsel %vm995, %v992, %v994
        %v1005 = vsel %vm618, %v978, 0
        %1007 = vmatprep.subr.mxu0 0.0
        %1008 = vmatpush1.msra.mxu0 %v996
        %1009 = vmatprep.subr.mxu0 0.0
        %1010 = vmatpush1.msra.mxu0 %v997
        %1011 = vmatprep.subr.mxu0 0.0
        %1012 = vmatpush1.msra.mxu0 %v998
        %1013 = vmatprep.subr.mxu0 0.0
        %1014 = vmatpush1.msra.mxu0 %v999
        %1015 = vmatprep.subr.mxu0 0.0
        %1016 = vmatpush1.msra.mxu0 0.0
        %1017 = vmatprep.subr.mxu0 0.0
        %1018 = vmatpush1.msra.mxu0 0.0
        %1019 = vmatprep.subr.mxu0 0.0
        %1020 = vmatpush1.msra.mxu0 0.0
        %1021 = vmatprep.subr.mxu0 0.0
        %1022 = vmatpush1.msra.mxu0 0.0
        %1023 = vmatprep.subr.mxu0 0.0
        %1024 = vmatpush1.msra.mxu0 0.0
        %1025 = vmatprep.subr.mxu0 0.0
        %1026 = vmatpush1.msra.mxu0 0.0
        %1027 = vmatprep.subr.mxu0 0.0
        %1028 = vmatpush1.msra.mxu0 0.0
        %1029 = vmatprep.subr.mxu0 0.0
        %1030 = vmatpush1.msra.mxu0 0.0
        %1031 = vmatprep.subr.mxu0 0.0
        %1032 = vmatpush1.msra.mxu0 0.0
        %1033 = vmatprep.subr.mxu0 0.0
        %1034 = vmatpush1.msra.mxu0 0.0
        %1035 = vmatprep.subr.mxu0 0.0
        %1036 = vmatpush1.msra.mxu0 0.0
        %1037 = vmatprep.subr.mxu0 0.0
        %1038 = vmatpush1.msra.mxu0 0.0
        %1039 = vmatprep.subr.mxu0 0.0
        %1040 = vmatpush1.msra.mxu0 0.0
        %1041 = vmatprep.subr.mxu0 0.0
        %1042 = vmatpush1.msra.mxu0 0.0
        %1043 = vmatprep.subr.mxu0 0.0
        %1044 = vmatpush1.msra.mxu0 0.0
        %1045 = vmatprep.subr.mxu0 0.0
        %1046 = vmatpush1.msra.mxu0 0.0
        %1047 = vmatprep.subr.mxu0 0.0
        %1048 = vmatpush1.msra.mxu0 0.0
        %1049 = vmatprep.subr.mxu0 0.0
        %1050 = vmatpush1.msra.mxu0 0.0
        %1051 = vmatprep.subr.mxu0 0.0
        %1052 = vmatpush1.msra.mxu0 0.0
        %1053 = vmatprep.subr.mxu0 0.0
        %1054 = vmatpush1.msra.mxu0 0.0
        %1055 = vmatprep.subr.mxu0 0.0
        %1056 = vmatpush1.msra.mxu0 0.0
        %1057 = vmatprep.subr.mxu0 0.0
        %1058 = vmatpush1.msra.mxu0 0.0
        %1059 = vmatprep.subr.mxu0 0.0
        %1060 = vmatpush1.msra.mxu0 0.0
        %1061 = vmatprep.subr.mxu0 0.0
        %1062 = vmatpush1.msra.mxu0 0.0
        %1063 = vmatprep.subr.mxu0 0.0
        %1064 = vmatpush1.msra.mxu0 0.0
        %1065 = vmatprep.subr.mxu0 0.0
        %1066 = vmatpush1.msra.mxu0 0.0
        %1067 = vmatprep.subr.mxu0 0.0
        %1068 = vmatpush1.msra.mxu0 0.0
        %1069 = vmatprep.subr.mxu0 0.0
        %1070 = vmatpush1.msra.mxu0 0.0
        %1071 = vmatprep.mubr.f32.mxu0 0.0
        %1072 = vmatmul.mubr.f32.gmra.mrb[0].mxu0 %v1005
        %v1073 = vpop.f32.mrb[0].mxu0
        %v1074 = vadd.f32 0.0, %v1073
        %v1075 = vpop.f32.mrb[0].mxu0
        %1076 = vdwg.mxu0
        %v1077 = vadd.f32 %v976, %v1074
        %1078 = vrot.lane.b32.xlu0 %v568, 110
        %v1079 = vpop.permute.xlu0 %1078
        %1080 = vrot.lane.b32.xlu0 %v579, 110
        %v1081 = vpop.permute.xlu0 %1080
        %1082 = vrot.lane.b32.xlu0 %v569, 110
        %v1083 = vpop.permute.xlu0 %1082
        %1084 = vrot.lane.b32.xlu0 %v580, 110
        %v1085 = vpop.permute.xlu0 %1084
        %1086 = vrot.lane.b32.xlu0 %v570, 110
        %v1087 = vpop.permute.xlu0 %1086
        %1088 = vrot.lane.b32.xlu0 %v581, 110
        %v1089 = vpop.permute.xlu0 %1088
        %1090 = vrot.lane.b32.xlu0 %v571, 110
        %v1091 = vpop.permute.xlu0 %1090
        %1092 = vrot.lane.b32.xlu0 %v582, 110
        %v1093 = vpop.permute.xlu0 %1092
        %vm1094 = vcmask 900096
        %v1095 = vsel %vm1094, %v1079, %v1081
        %v1096 = vsel %vm1094, %v1083, %v1085
        %v1097 = vsel %vm1094, %v1087, %v1089
        %v1098 = vsel %vm1094, %v1091, %v1093
        %v1103 = vsel %vm766, %v1095, 0.0
        %v1104 = vsel %vm766, %v1096, 0.0
        %v1105 = vsel %vm766, %v1097, 0.0
        %v1106 = vsel %vm766, %v1098, 0.0
        %s1107 = scalar_lea.vmem [#allocation9], 40
        %v1108 = vld [vmem:[%s1107] sm:$0xff]
        %v1110 = vsel %vm618, %v1108, 0
        %1112 = vmatprep.subr.mxu0 0.0
        %1113 = vmatpush1.msra.mxu0 %v1103
        %1114 = vmatprep.subr.mxu0 0.0
        %1115 = vmatpush1.msra.mxu0 %v1104
        %1116 = vmatprep.subr.mxu0 0.0
        %1117 = vmatpush1.msra.mxu0 %v1105
        %1118 = vmatprep.subr.mxu0 0.0
        %1119 = vmatpush1.msra.mxu0 %v1106
        %1120 = vmatprep.subr.mxu0 0.0
        %1121 = vmatpush1.msra.mxu0 0.0
        %1122 = vmatprep.subr.mxu0 0.0
        %1123 = vmatpush1.msra.mxu0 0.0
        %1124 = vmatprep.subr.mxu0 0.0
        %1125 = vmatpush1.msra.mxu0 0.0
        %1126 = vmatprep.subr.mxu0 0.0
        %1127 = vmatpush1.msra.mxu0 0.0
        %1128 = vmatprep.subr.mxu0 0.0
        %1129 = vmatpush1.msra.mxu0 0.0
        %1130 = vmatprep.subr.mxu0 0.0
        %1131 = vmatpush1.msra.mxu0 0.0
        %1132 = vmatprep.subr.mxu0 0.0
        %1133 = vmatpush1.msra.mxu0 0.0
        %1134 = vmatprep.subr.mxu0 0.0
        %1135 = vmatpush1.msra.mxu0 0.0
        %1136 = vmatprep.subr.mxu0 0.0
        %1137 = vmatpush1.msra.mxu0 0.0
        %1138 = vmatprep.subr.mxu0 0.0
        %1139 = vmatpush1.msra.mxu0 0.0
        %1140 = vmatprep.subr.mxu0 0.0
        %1141 = vmatpush1.msra.mxu0 0.0
        %1142 = vmatprep.subr.mxu0 0.0
        %1143 = vmatpush1.msra.mxu0 0.0
        %1144 = vmatprep.subr.mxu0 0.0
        %1145 = vmatpush1.msra.mxu0 0.0
        %1146 = vmatprep.subr.mxu0 0.0
        %1147 = vmatpush1.msra.mxu0 0.0
        %1148 = vmatprep.subr.mxu0 0.0
        %1149 = vmatpush1.msra.mxu0 0.0
        %1150 = vmatprep.subr.mxu0 0.0
        %1151 = vmatpush1.msra.mxu0 0.0
        %1152 = vmatprep.subr.mxu0 0.0
        %1153 = vmatpush1.msra.mxu0 0.0
        %1154 = vmatprep.subr.mxu0 0.0
        %1155 = vmatpush1.msra.mxu0 0.0
        %1156 = vmatprep.subr.mxu0 0.0
        %1157 = vmatpush1.msra.mxu0 0.0
        %1158 = vmatprep.subr.mxu0 0.0
        %1159 = vmatpush1.msra.mxu0 0.0
        %1160 = vmatprep.subr.mxu0 0.0
        %1161 = vmatpush1.msra.mxu0 0.0
        %1162 = vmatprep.subr.mxu0 0.0
        %1163 = vmatpush1.msra.mxu0 0.0
        %1164 = vmatprep.subr.mxu0 0.0
        %1165 = vmatpush1.msra.mxu0 0.0
        %1166 = vmatprep.subr.mxu0 0.0
        %1167 = vmatpush1.msra.mxu0 0.0
        %1168 = vmatprep.subr.mxu0 0.0
        %1169 = vmatpush1.msra.mxu0 0.0
        %1170 = vmatprep.subr.mxu0 0.0
        %1171 = vmatpush1.msra.mxu0 0.0
        %1172 = vmatprep.subr.mxu0 0.0
        %1173 = vmatpush1.msra.mxu0 0.0
        %1174 = vmatprep.subr.mxu0 0.0
        %1175 = vmatpush1.msra.mxu0 0.0
        %1176 = vmatprep.mubr.f32.mxu0 0.0
        %1177 = vmatmul.mubr.f32.gmra.mrb[0].mxu0 %v1110
        %v1178 = vpop.f32.mrb[0].mxu0
        %v1179 = vadd.f32 0.0, %v1178
        %v1180 = vpop.f32.mrb[0].mxu0
        %1181 = vdwg.mxu0
        %v1182 = vadd.f32 %v1077, %v1179
        %1183 = vrot.lane.b32.xlu0 %v568, 96
        %v1184 = vpop.permute.xlu0 %1183
        %1185 = vrot.lane.b32.xlu0 %v579, 96
        %v1186 = vpop.permute.xlu0 %1185
        %1187 = vrot.lane.b32.xlu0 %v569, 96
        %v1188 = vpop.permute.xlu0 %1187
        %1189 = vrot.lane.b32.xlu0 %v580, 96
        %v1190 = vpop.permute.xlu0 %1189
        %1191 = vrot.lane.b32.xlu0 %v570, 96
        %v1192 = vpop.permute.xlu0 %1191
        %1193 = vrot.lane.b32.xlu0 %v581, 96
        %v1194 = vpop.permute.xlu0 %1193
        %1195 = vrot.lane.b32.xlu0 %v571, 96
        %v1196 = vpop.permute.xlu0 %1195
        %1197 = vrot.lane.b32.xlu0 %v582, 96
        %v1198 = vpop.permute.xlu0 %1197
        %vm1199 = vcmask 785408
        %v1200 = vsel %vm1199, %v1184, %v1186
        %v1201 = vsel %vm1199, %v1188, %v1190
        %v1202 = vsel %vm1199, %v1192, %v1194
        %v1203 = vsel %vm1199, %v1196, %v1198
        %v1208 = vsel %vm573, %v1200, 0.0
        %v1209 = vsel %vm573, %v1201, 0.0
        %v1210 = vsel %vm573, %v1202, 0.0
        %v1211 = vsel %vm573, %v1203, 0.0
        %s1212 = scalar_lea.vmem [#allocation9], 48
        %v1213 = vld [vmem:[%s1212] sm:$0xff]
        %v1215 = vsel %vm618, %v1213, 0
        %1217 = vmatprep.subr.mxu0 0.0
        %1218 = vmatpush1.msra.mxu0 %v1208
        %1219 = vmatprep.subr.mxu0 0.0
        %1220 = vmatpush1.msra.mxu0 %v1209
        %1221 = vmatprep.subr.mxu0 0.0
        %1222 = vmatpush1.msra.mxu0 %v1210
        %1223 = vmatprep.subr.mxu0 0.0
        %1224 = vmatpush1.msra.mxu0 %v1211
        %1225 = vmatprep.subr.mxu0 0.0
        %1226 = vmatpush1.msra.mxu0 0.0
        %1227 = vmatprep.subr.mxu0 0.0
        %1228 = vmatpush1.msra.mxu0 0.0
        %1229 = vmatprep.subr.mxu0 0.0
        %1230 = vmatpush1.msra.mxu0 0.0
        %1231 = vmatprep.subr.mxu0 0.0
        %1232 = vmatpush1.msra.mxu0 0.0
        %1233 = vmatprep.subr.mxu0 0.0
        %1234 = vmatpush1.msra.mxu0 0.0
        %1235 = vmatprep.subr.mxu0 0.0
        %1236 = vmatpush1.msra.mxu0 0.0
        %1237 = vmatprep.subr.mxu0 0.0
        %1238 = vmatpush1.msra.mxu0 0.0
        %1239 = vmatprep.subr.mxu0 0.0
        %1240 = vmatpush1.msra.mxu0 0.0
        %1241 = vmatprep.subr.mxu0 0.0
        %1242 = vmatpush1.msra.mxu0 0.0
        %1243 = vmatprep.subr.mxu0 0.0
        %1244 = vmatpush1.msra.mxu0 0.0
        %1245 = vmatprep.subr.mxu0 0.0
        %1246 = vmatpush1.msra.mxu0 0.0
        %1247 = vmatprep.subr.mxu0 0.0
        %1248 = vmatpush1.msra.mxu0 0.0
        %1249 = vmatprep.subr.mxu0 0.0
        %1250 = vmatpush1.msra.mxu0 0.0
        %1251 = vmatprep.subr.mxu0 0.0
        %1252 = vmatpush1.msra.mxu0 0.0
        %1253 = vmatprep.subr.mxu0 0.0
        %1254 = vmatpush1.msra.mxu0 0.0
        %1255 = vmatprep.subr.mxu0 0.0
        %1256 = vmatpush1.msra.mxu0 0.0
        %1257 = vmatprep.subr.mxu0 0.0
        %1258 = vmatpush1.msra.mxu0 0.0
        %1259 = vmatprep.subr.mxu0 0.0
        %1260 = vmatpush1.msra.mxu0 0.0
        %1261 = vmatprep.subr.mxu0 0.0
        %1262 = vmatpush1.msra.mxu0 0.0
        %1263 = vmatprep.subr.mxu0 0.0
        %1264 = vmatpush1.msra.mxu0 0.0
        %1265 = vmatprep.subr.mxu0 0.0
        %1266 = vmatpush1.msra.mxu0 0.0
        %1267 = vmatprep.subr.mxu0 0.0
        %1268 = vmatpush1.msra.mxu0 0.0
        %1269 = vmatprep.subr.mxu0 0.0
        %1270 = vmatpush1.msra.mxu0 0.0
        %1271 = vmatprep.subr.mxu0 0.0
        %1272 = vmatpush1.msra.mxu0 0.0
        %1273 = vmatprep.subr.mxu0 0.0
        %1274 = vmatpush1.msra.mxu0 0.0
        %1275 = vmatprep.subr.mxu0 0.0
        %1276 = vmatpush1.msra.mxu0 0.0
        %1277 = vmatprep.subr.mxu0 0.0
        %1278 = vmatpush1.msra.mxu0 0.0
        %1279 = vmatprep.subr.mxu0 0.0
        %1280 = vmatpush1.msra.mxu0 0.0
        %1281 = vmatprep.mubr.f32.mxu0 0.0
        %1282 = vmatmul.mubr.f32.gmra.mrb[0].mxu0 %v1215
        %v1283 = vpop.f32.mrb[0].mxu0
        %v1284 = vadd.f32 0.0, %v1283
        %v1285 = vpop.f32.mrb[0].mxu0
        %1286 = vdwg.mxu0
        %v1287 = vadd.f32 %v1182, %v1284
        %s1288 = scalar_lea.vmem [#allocation9], 56
        %v1289 = vld [vmem:[%s1288] sm:$0xff]
        %1290 = vrot.lane.b32.xlu0 %v568, 95
        %v1291 = vpop.permute.xlu0 %1290
        %1292 = vrot.lane.b32.xlu0 %v579, 95
        %v1293 = vpop.permute.xlu0 %1292
        %1294 = vrot.lane.b32.xlu0 %v569, 95
        %v1295 = vpop.permute.xlu0 %1294
        %1296 = vrot.lane.b32.xlu0 %v580, 95
        %v1297 = vpop.permute.xlu0 %1296
        %1298 = vrot.lane.b32.xlu0 %v570, 95
        %v1299 = vpop.permute.xlu0 %1298
        %1300 = vrot.lane.b32.xlu0 %v581, 95
        %v1301 = vpop.permute.xlu0 %1300
        %1302 = vrot.lane.b32.xlu0 %v571, 95
        %v1303 = vpop.permute.xlu0 %1302
        %1304 = vrot.lane.b32.xlu0 %v582, 95
        %v1305 = vpop.permute.xlu0 %1304
        %vm1306 = vcmask 777216
        %v1307 = vsel %vm1306, %v1291, %v1293
        %v1308 = vsel %vm1306, %v1295, %v1297
        %v1309 = vsel %vm1306, %v1299, %v1301
        %v1310 = vsel %vm1306, %v1303, %v1305
        %v1316 = vsel %vm618, %v1289, 0
        %1318 = vmatprep.subr.mxu0 0.0
        %1319 = vmatpush1.msra.mxu0 %v1307
        %1320 = vmatprep.subr.mxu0 0.0
        %1321 = vmatpush1.msra.mxu0 %v1308
        %1322 = vmatprep.subr.mxu0 0.0
        %1323 = vmatpush1.msra.mxu0 %v1309
        %1324 = vmatprep.subr.mxu0 0.0
        %1325 = vmatpush1.msra.mxu0 %v1310
        %1326 = vmatprep.subr.mxu0 0.0
        %1327 = vmatpush1.msra.mxu0 0.0
        %1328 = vmatprep.subr.mxu0 0.0
        %1329 = vmatpush1.msra.mxu0 0.0
        %1330 = vmatprep.subr.mxu0 0.0
        %1331 = vmatpush1.msra.mxu0 0.0
        %1332 = vmatprep.subr.mxu0 0.0
        %1333 = vmatpush1.msra.mxu0 0.0
        %1334 = vmatprep.subr.mxu0 0.0
        %1335 = vmatpush1.msra.mxu0 0.0
        %1336 = vmatprep.subr.mxu0 0.0
        %1337 = vmatpush1.msra.mxu0 0.0
        %1338 = vmatprep.subr.mxu0 0.0
        %1339 = vmatpush1.msra.mxu0 0.0
        %1340 = vmatprep.subr.mxu0 0.0
        %1341 = vmatpush1.msra.mxu0 0.0
        %1342 = vmatprep.subr.mxu0 0.0
        %1343 = vmatpush1.msra.mxu0 0.0
        %1344 = vmatprep.subr.mxu0 0.0
        %1345 = vmatpush1.msra.mxu0 0.0
        %1346 = vmatprep.subr.mxu0 0.0
        %1347 = vmatpush1.msra.mxu0 0.0
        %1348 = vmatprep.subr.mxu0 0.0
        %1349 = vmatpush1.msra.mxu0 0.0
        %1350 = vmatprep.subr.mxu0 0.0
        %1351 = vmatpush1.msra.mxu0 0.0
        %1352 = vmatprep.subr.mxu0 0.0
        %1353 = vmatpush1.msra.mxu0 0.0
        %1354 = vmatprep.subr.mxu0 0.0
        %1355 = vmatpush1.msra.mxu0 0.0
        %1356 = vmatprep.subr.mxu0 0.0
        %1357 = vmatpush1.msra.mxu0 0.0
        %1358 = vmatprep.subr.mxu0 0.0
        %1359 = vmatpush1.msra.mxu0 0.0
        %1360 = vmatprep.subr.mxu0 0.0
        %1361 = vmatpush1.msra.mxu0 0.0
        %1362 = vmatprep.subr.mxu0 0.0
        %1363 = vmatpush1.msra.mxu0 0.0
        %1364 = vmatprep.subr.mxu0 0.0
        %1365 = vmatpush1.msra.mxu0 0.0
        %1366 = vmatprep.subr.mxu0 0.0
        %1367 = vmatpush1.msra.mxu0 0.0
        %1368 = vmatprep.subr.mxu0 0.0
        %1369 = vmatpush1.msra.mxu0 0.0
        %1370 = vmatprep.subr.mxu0 0.0
        %1371 = vmatpush1.msra.mxu0 0.0
        %1372 = vmatprep.subr.mxu0 0.0
        %1373 = vmatpush1.msra.mxu0 0.0
        %1374 = vmatprep.subr.mxu0 0.0
        %1375 = vmatpush1.msra.mxu0 0.0
        %1376 = vmatprep.subr.mxu0 0.0
        %1377 = vmatpush1.msra.mxu0 0.0
        %1378 = vmatprep.subr.mxu0 0.0
        %1379 = vmatpush1.msra.mxu0 0.0
        %1380 = vmatprep.subr.mxu0 0.0
        %1381 = vmatpush1.msra.mxu0 0.0
        %1382 = vmatprep.mubr.f32.mxu0 0.0
        %1383 = vmatmul.mubr.f32.gmra.mrb[0].mxu0 %v1316
        %v1384 = vpop.f32.mrb[0].mxu0
        %v1385 = vadd.f32 0.0, %v1384
        %v1386 = vpop.f32.mrb[0].mxu0
        %1387 = vdwg.mxu0
        %v1388 = vadd.f32 %v1287, %v1385
        %1389 = vrot.lane.b32.xlu0 %v568, 94
        %v1390 = vpop.permute.xlu0 %1389
        %1391 = vrot.lane.b32.xlu0 %v579, 94
        %v1392 = vpop.permute.xlu0 %1391
        %1393 = vrot.lane.b32.xlu0 %v569, 94
        %v1394 = vpop.permute.xlu0 %1393
        %1395 = vrot.lane.b32.xlu0 %v580, 94
        %v1396 = vpop.permute.xlu0 %1395
        %1397 = vrot.lane.b32.xlu0 %v570, 94
        %v1398 = vpop.permute.xlu0 %1397
        %1399 = vrot.lane.b32.xlu0 %v581, 94
        %v1400 = vpop.permute.xlu0 %1399
        %1401 = vrot.lane.b32.xlu0 %v571, 94
        %v1402 = vpop.permute.xlu0 %1401
        %1403 = vrot.lane.b32.xlu0 %v582, 94
        %v1404 = vpop.permute.xlu0 %1403
        %vm1405 = vcmask 769024
        %v1406 = vsel %vm1405, %v1390, %v1392
        %v1407 = vsel %vm1405, %v1394, %v1396
        %v1408 = vsel %vm1405, %v1398, %v1400
        %v1409 = vsel %vm1405, %v1402, %v1404
        %v1414 = vsel %vm766, %v1406, 0.0
        %v1415 = vsel %vm766, %v1407, 0.0
        %v1416 = vsel %vm766, %v1408, 0.0
        %v1417 = vsel %vm766, %v1409, 0.0
        %s1418 = scalar_lea.vmem [#allocation9], 64
        %v1419 = vld [vmem:[%s1418] sm:$0xff]
        %v1421 = vsel %vm618, %v1419, 0
        %1423 = vmatprep.subr.mxu0 0.0
        %1424 = vmatpush1.msra.mxu0 %v1414
        %1425 = vmatprep.subr.mxu0 0.0
        %1426 = vmatpush1.msra.mxu0 %v1415
        %1427 = vmatprep.subr.mxu0 0.0
        %1428 = vmatpush1.msra.mxu0 %v1416
        %1429 = vmatprep.subr.mxu0 0.0
        %1430 = vmatpush1.msra.mxu0 %v1417
        %1431 = vmatprep.subr.mxu0 0.0
        %1432 = vmatpush1.msra.mxu0 0.0
        %1433 = vmatprep.subr.mxu0 0.0
        %1434 = vmatpush1.msra.mxu0 0.0
        %1435 = vmatprep.subr.mxu0 0.0
        %1436 = vmatpush1.msra.mxu0 0.0
        %1437 = vmatprep.subr.mxu0 0.0
        %1438 = vmatpush1.msra.mxu0 0.0
        %1439 = vmatprep.subr.mxu0 0.0
        %1440 = vmatpush1.msra.mxu0 0.0
        %1441 = vmatprep.subr.mxu0 0.0
        %1442 = vmatpush1.msra.mxu0 0.0
        %1443 = vmatprep.subr.mxu0 0.0
        %1444 = vmatpush1.msra.mxu0 0.0
        %1445 = vmatprep.subr.mxu0 0.0
        %1446 = vmatpush1.msra.mxu0 0.0
        %1447 = vmatprep.subr.mxu0 0.0
        %1448 = vmatpush1.msra.mxu0 0.0
        %1449 = vmatprep.subr.mxu0 0.0
        %1450 = vmatpush1.msra.mxu0 0.0
        %1451 = vmatprep.subr.mxu0 0.0
        %1452 = vmatpush1.msra.mxu0 0.0
        %1453 = vmatprep.subr.mxu0 0.0
        %1454 = vmatpush1.msra.mxu0 0.0
        %1455 = vmatprep.subr.mxu0 0.0
        %1456 = vmatpush1.msra.mxu0 0.0
        %1457 = vmatprep.subr.mxu0 0.0
        %1458 = vmatpush1.msra.mxu0 0.0
        %1459 = vmatprep.subr.mxu0 0.0
        %1460 = vmatpush1.msra.mxu0 0.0
        %1461 = vmatprep.subr.mxu0 0.0
        %1462 = vmatpush1.msra.mxu0 0.0
        %1463 = vmatprep.subr.mxu0 0.0
        %1464 = vmatpush1.msra.mxu0 0.0
        %1465 = vmatprep.subr.mxu0 0.0
        %1466 = vmatpush1.msra.mxu0 0.0
        %1467 = vmatprep.subr.mxu0 0.0
        %1468 = vmatpush1.msra.mxu0 0.0
        %1469 = vmatprep.subr.mxu0 0.0
        %1470 = vmatpush1.msra.mxu0 0.0
        %1471 = vmatprep.subr.mxu0 0.0
        %1472 = vmatpush1.msra.mxu0 0.0
        %1473 = vmatprep.subr.mxu0 0.0
        %1474 = vmatpush1.msra.mxu0 0.0
        %1475 = vmatprep.subr.mxu0 0.0
        %1476 = vmatpush1.msra.mxu0 0.0
        %1477 = vmatprep.subr.mxu0 0.0
        %1478 = vmatpush1.msra.mxu0 0.0
        %1479 = vmatprep.subr.mxu0 0.0
        %1480 = vmatpush1.msra.mxu0 0.0
        %1481 = vmatprep.subr.mxu0 0.0
        %1482 = vmatpush1.msra.mxu0 0.0
        %1483 = vmatprep.subr.mxu0 0.0
        %1484 = vmatpush1.msra.mxu0 0.0
        %1485 = vmatprep.subr.mxu0 0.0
        %1486 = vmatpush1.msra.mxu0 0.0
        %1487 = vmatprep.mubr.f32.mxu0 0.0
        %1488 = vmatmul.mubr.f32.gmra.mrb[0].mxu0 %v1421
        %v1489 = vpop.f32.mrb[0].mxu0
        %v1490 = vadd.f32 0.0, %v1489
        %v1491 = vpop.f32.mrb[0].mxu0
        %1492 = vdwg.mxu0
        %v1493 = vadd.f32 %v1388, %v1490
        %v1494 = vld [vmem:[%s4] sm:$0xff]
        %1496 = vset.pattern.permute.xlu0 0
        %1497 = vperm.xlu0 %1496, %v1494
        %v1498 = vpop.permute.xlu0 %1497
        %v1500 = vadd.f32 %v1493, %v1498
        %v1501 = vmax.f32 %v1500, 0.0
        %v1502 = vld [vmem:[%s5] sm:$0xff]
        %v1503 = vld [vmem:[%s5 + $0x8] sm:$0xff]
        %v1504 = vld [vmem:[%s6] sm:$0xff]
        %v1505 = vld [vmem:[%s6 + $0x8] sm:$0xff]
        %1507 = vset.pattern.permute.xlu0 0
        %1508 = vperm.xlu0 %1507, %v1504
        %v1509 = vpop.permute.xlu0 %1508
        %1512 = vset.pattern.permute.xlu0 0
        %1513 = vperm.xlu0 %1512, %v1505
        %v1514 = vpop.permute.xlu0 %1513
        %vm1516 = vcmask 64512
        %v1518 = vsel %vm1516, %v1502, 0
        %v1521 = vsel %vm1516, %v1503, 0
        %1523 = vmatprep.subr.mxu0 0.0
        %1524 = vmatpush1.msra.mxu0 %v1501
        %1525 = vmatprep.subr.mxu0 0.0
        %1526 = vmatpush1.msra.mxu0 0.0
        %1527 = vmatprep.subr.mxu0 0.0
        %1528 = vmatpush1.msra.mxu0 0.0
        %1529 = vmatprep.subr.mxu0 0.0
        %1530 = vmatpush1.msra.mxu0 0.0
        %1531 = vmatprep.subr.mxu0 0.0
        %1532 = vmatpush1.msra.mxu0 0.0
        %1533 = vmatprep.subr.mxu0 0.0
        %1534 = vmatpush1.msra.mxu0 0.0
        %1535 = vmatprep.subr.mxu0 0.0
        %1536 = vmatpush1.msra.mxu0 0.0
        %1537 = vmatprep.subr.mxu0 0.0
        %1538 = vmatpush1.msra.mxu0 0.0
        %1539 = vmatprep.subr.mxu0 0.0
        %1540 = vmatpush1.msra.mxu0 0.0
        %1541 = vmatprep.subr.mxu0 0.0
        %1542 = vmatpush1.msra.mxu0 0.0
        %1543 = vmatprep.subr.mxu0 0.0
        %1544 = vmatpush1.msra.mxu0 0.0
        %1545 = vmatprep.subr.mxu0 0.0
        %1546 = vmatpush1.msra.mxu0 0.0
        %1547 = vmatprep.subr.mxu0 0.0
        %1548 = vmatpush1.msra.mxu0 0.0
        %1549 = vmatprep.subr.mxu0 0.0
        %1550 = vmatpush1.msra.mxu0 0.0
        %1551 = vmatprep.subr.mxu0 0.0
        %1552 = vmatpush1.msra.mxu0 0.0
        %1553 = vmatprep.subr.mxu0 0.0
        %1554 = vmatpush1.msra.mxu0 0.0
        %1555 = vmatprep.subr.mxu0 0.0
        %1556 = vmatpush1.msra.mxu0 0.0
        %1557 = vmatprep.subr.mxu0 0.0
        %1558 = vmatpush1.msra.mxu0 0.0
        %1559 = vmatprep.subr.mxu0 0.0
        %1560 = vmatpush1.msra.mxu0 0.0
        %1561 = vmatprep.subr.mxu0 0.0
        %1562 = vmatpush1.msra.mxu0 0.0
        %1563 = vmatprep.subr.mxu0 0.0
        %1564 = vmatpush1.msra.mxu0 0.0
        %1565 = vmatprep.subr.mxu0 0.0
        %1566 = vmatpush1.msra.mxu0 0.0
        %1567 = vmatprep.subr.mxu0 0.0
        %1568 = vmatpush1.msra.mxu0 0.0
        %1569 = vmatprep.subr.mxu0 0.0
        %1570 = vmatpush1.msra.mxu0 0.0
        %1571 = vmatprep.subr.mxu0 0.0
        %1572 = vmatpush1.msra.mxu0 0.0
        %1573 = vmatprep.subr.mxu0 0.0
        %1574 = vmatpush1.msra.mxu0 0.0
        %1575 = vmatprep.subr.mxu0 0.0
        %1576 = vmatpush1.msra.mxu0 0.0
        %1577 = vmatprep.subr.mxu0 0.0
        %1578 = vmatpush1.msra.mxu0 0.0
        %1579 = vmatprep.subr.mxu0 0.0
        %1580 = vmatpush1.msra.mxu0 0.0
        %1581 = vmatprep.subr.mxu0 0.0
        %1582 = vmatpush1.msra.mxu0 0.0
        %1583 = vmatprep.subr.mxu0 0.0
        %1584 = vmatpush1.msra.mxu0 0.0
        %1585 = vmatprep.subr.mxu0 0.0
        %1586 = vmatpush1.msra.mxu0 0.0
        %1587 = vmatprep.mubr.f32.mxu0 0.0
        %1588 = vmatmul.mubr.f32.gmra.mrb[0].mxu0 %v1518
        %v1589 = vpop.f32.mrb[0].mxu0
        %v1590 = vadd.f32 %v1509, %v1589
        %v1591 = vpop.f32.mrb[0].mxu0
        %1592 = vmatprep.mubr.f32.mxu0 0.0
        %1593 = vmatmul.mubr.f32.gmra.mrb[0].mxu0 %v1521
        %v1594 = vpop.f32.mrb[0].mxu0
        %v1595 = vadd.f32 %v1514, %v1594
        %v1596 = vpop.f32.mrb[0].mxu0
        %1597 = vdwg.mxu0
        %v1598 = vmax.f32 %v1590, %v1595
        %v1599 = vrot.slane %v1598, 4
        %v1600 = vmax.f32 %v1598, %v1599
        %v1601 = vrot.slane %v1600, 2
        %v1602 = vmax.f32 %v1600, %v1601
        %v1603 = vrot.slane %v1602, 1
        %v1604 = vmax.f32 %v1602, %v1603
        %v1605 = vsub.f32 %v1590, %v1604
        %v1606 = vsub.f32 %v1595, %v1604
        %v1607 = vmul.f32 %v1605, 1.442695
        %v1608 = vpow.pop %v1607
        %v1609 = vmul.f32 %v1606, 1.442695
        %v1610 = vpow.pop %v1609
        %v1611 = vadd.f32 %v1608, %v1610
        %v1612 = vrot.slane %v1611, 4
        %v1613 = vadd.f32 %v1611, %v1612
        %v1614 = vrot.slane %v1613, 2
        %v1615 = vadd.f32 %v1613, %v1614
        %v1616 = vrot.slane %v1615, 1
        %v1617 = vadd.f32 %v1615, %v1616
        %v1618 = vrcp.pop %v1617
        %v1619 = vmul.f32 %v1617, %v1618
        %v1620 = vsub.f32 2.0, %v1619
        %v1621 = vmul.f32 %v1618, %v1620
        %v1622 = vmul.f32 %v1608, %v1621
        %v1623 = vmul.f32 %v1610, %v1621
        %1624 = vst [vmem:[%s429] sm:$0xff] %v1622
        %1625 = vst [vmem:[%s429 + $0x8] sm:$0xff] %v1623
        %s1626 = sand.u32 %s230, 1
        %s1627 = scalar_lea.sflag [#allocation5], %s1626
        %s1628 = sand.u32 %s230, 1
        %s1629 = smul.addr %s1628, 16
        %s1630 = scalar_lea.vmem [#allocation11], %s1629
        // Predicated region
        $region81: #{tpu_custom_call.1} parent=47 // pred_check
          %p1631 = pneg %p240
        $region82: #{tpu_custom_call.1} parent=47 // pred_check_branch
          %1633 = sbr.rel (%p1631) target = $region84
        $region83: #{tpu_custom_call.1} parent=47 // pred_region
          %s1635 = ssub.s32 256, 256
          %1636 = vsyncadd %s1627, %s1635
          %s1637 = smul.addr %s32, 4
          %s1638 = sadd.s32 %s33, %s1637
          %s1639 = smul.addr %s1638, 128
          %s1640 = scalar_lea.hbm %s7, %s1639
          %s1641 = sshll.u32 %s1630, 4
          %s1642 = int_to_ptr.vmem [resolvable:$true] %s1641
          %1647 = dma.vmem_to_hbm [thread:$0]  %s1642, 256, %s1640, %s1627, 128, 256, 8
        $region84: #{tpu_custom_call.1} parent=47 // pred_fallthru
          _
      $region48: #{tpu_custom_call.1} parent=5 // pred_fallthru
        _
      %p1648 = scmp.le.s32.totalorder 2, %s23
      // Predicated region
      $region85: #{tpu_custom_call.1} parent=5 // pred_check
        %p1649 = pneg %p1648
      $region86: #{tpu_custom_call.1} parent=5 // pred_check_branch
        %1651 = sbr.rel (%p1649) target = $region88
      $region87: #{tpu_custom_call.1} parent=5 // pred_region
        %s1652 = ssub.s32 %s23, 2
        // Predicated region
        $region89: #{tpu_custom_call.1} parent=87 // pred_check
          %p1653 = pneg %p246
        $region90: #{tpu_custom_call.1} parent=87 // pred_check_branch
          %1655 = sbr.rel (%p1653) target = $region92
        $region91: #{tpu_custom_call.1} parent=87 // pred_region
          %s1656 = sand.u32 %s231, 1
          %s1657 = scalar_lea.sflag [#allocation5], %s1656
          %s1658 = sand.u32 %s231, 1
          %s1659 = smul.addr %s1658, 16
          %s1660 = scalar_lea.vmem [#allocation11], %s1659
          %1661 = dma.done %s1657, 256
        $region92: #{tpu_custom_call.1} parent=87 // pred_fallthru
          _
      $region88: #{tpu_custom_call.1} parent=5 // pred_fallthru
        _
    $region6: #{tpu_custom_call.1} parent=1 // loop_footer
      %s27 = sadd.s32 1, %s23
    $region7: #{tpu_custom_call.1} parent=1 // loop_footer_branch
      %22 = sbr.rel target = $region3
    $region8: #{tpu_custom_call.1} parent=1 // loop_exit
      _
    %1662 = vsyncpa [#allocation4], 1
    %s1663 = scalar_lea.sflag [#allocation4], 1
    %1664 = vsyncpa %s1663, 1
    %1665 = vsyncpa [#allocation7], 1
    %s1666 = scalar_lea.sflag [#allocation7], 1
    %1667 = vsyncpa %s1666, 1
    %1668 = vsyncpa [#allocation10], 1
    %1669 = vsyncpa [#allocation5], 1
    %s1670 = scalar_lea.sflag [#allocation5], 1
    %1671 = vsyncpa %s1670, 1

</llo_original>
